<compile_context>
chip_gen: v6e
topology: v6e:2x2x1
jax: 0.10.0
libtpu: 0.0.40
codegen_flags: <defaults>
</compile_context>

<pallas_src>
import numpy as np
import jax
import jax.numpy as jnp
from jax import lax
from jax.experimental import pallas as pl
from jax.experimental.pallas import tpu as pltpu

# ----------------------------- config (small) -------------------------------
T = 8             # sentence length
E = 32            # stand-in for BERT hidden size
HIDDEN = 32       # hidden_dim (module uses 1000; scaled down)
HH = HIDDEN // 2  # per-direction LSTM hidden size
TAGS = 9          # len(tag_to_ix)
START_IDX = 7     # tag_to_ix['<START>']
STOP_IDX = 8      # tag_to_ix['<STOP>']
NEG = -10000.0    # module's "impossible transition" constant
P = 16            # tag dim padded to 16 lanes
NEG_PAD = -1.0e30 # padding value (never wins a max)
AUG = 2 * HH + 8  # hidden2tag contraction dim (hidden + ones block for bias)
G2 = 2 * HH       # width of one fused gate chunk (fwd|bwd)


# --------------------- fused BiLSTM + hidden2tag + Viterbi -------------------
def bilstm_crf_kernel(x2_ref, wa_ref, wb_ref, score_ref, path_ref, feats_ref):
    f32 = jnp.float32

    # packed parameter slabs (static windows of VMEM-resident inputs)
    wih2 = wa_ref[pl.ds(0, 2 * E), :]               # (2E, 8HH) gate-interleaved
    whh2 = wa_ref[pl.ds(2 * E, 2 * HH), :]          # (2HH, 8HH) block-diagonal
    brow = wa_ref[pl.ds(2 * E + 2 * HH, 1), :]      # (1, 8HH) fused bias
    wtagT = wb_ref[pl.ds(0, AUG), :]                # (AUG, P) hidden2tag (+bias)
    trans = wb_ref[pl.ds(AUG, P), :]                # (P, P)  transitions[next, prev]
    transT = wb_ref[pl.ds(AUG + P, P), :]           # (P, P)  transitions.T

    # ---- BiLSTM: input projection for every timestep, one 128-lane matmul --
    x2 = x2_ref[...]                                # (T, 2E) = [x_t | x_{T-1-t}]
    xg = jnp.dot(x2, wih2, preferred_element_type=f32) + brow    # (T, 8HH)

    # fused fwd+bwd recurrence, fully unrolled.  h/c = [fwd(HH) | bwd(HH)].
    h = jnp.zeros((1, 2 * HH), f32)
    c = jnp.zeros((1, 2 * HH), f32)
    h_hist = []
    for t in range(T):
        g = xg[t:t + 1, :] + jnp.dot(h, whh2, preferred_element_type=f32)
        ii = jax.nn.sigmoid(g[:, 0 * G2:1 * G2])    # PyTorch gate order i,f,g,o
        ff = jax.nn.sigmoid(g[:, 1 * G2:2 * G2])
        gg = jnp.tanh(g[:, 2 * G2:3 * G2])
        oo = jax.nn.sigmoid(g[:, 3 * G2:4 * G2])
        c = ff * c + ii * gg
        h = oo * jnp.tanh(c)
        h_hist.append(h)

    # time-ordered hidden: lanes <HH from iteration t (fwd), lanes >=HH from
    # iteration T-1-t (bwd).  One lane-select, no masked sub-lane stores.
    lane2 = lax.broadcasted_iota(jnp.int32, (1, 2 * HH), 1)
    h_iter = jnp.concatenate(h_hist, axis=0)        # (T, 2HH) iteration order
    h_flip = jnp.concatenate(h_hist[::-1], axis=0)  # (T, 2HH) reversed
    hidden = jnp.where(lane2 < HH, h_iter, h_flip)  # (T, 2HH) time order

    # hidden2tag (bias folded into the matmul via a ones block)
    hidden_aug = jnp.concatenate(
        [hidden, jnp.ones((T, AUG - 2 * HH), f32)], axis=1)        # (T, AUG)
    feats = jnp.dot(hidden_aug, wtagT, preferred_element_type=f32)  # (T, P)
    feats_ref[...] = feats

    # ------------------------------- Viterbi --------------------------------
    lane_p = lax.broadcasted_iota(jnp.int32, (1, P), 1)
    sub_p = lax.broadcasted_iota(jnp.int32, (P, 1), 0)
    lane_pp = lax.broadcasted_iota(jnp.int32, (P, P), 1)
    sub_pp = lax.broadcasted_iota(jnp.int32, (P, P), 0)
    diag = lane_pp == sub_pp

    def row_to_col(r):  # bitwise-exact (1,P)->(P,1); independent of the DP chain
        return jnp.max(jnp.where(diag, jnp.broadcast_to(r, (P, P)), -jnp.inf),
                       axis=1, keepdims=True)

    # feat columns needed at even DP steps (computed off the serial chain)
    feat_col = {t: row_to_col(feats[t:t + 1, :]) for t in range(0, T, 2)}

    # init forward_var over prev tags (row, tags on lanes); pads never win
    fv = jnp.where(lane_p == START_IDX, 0.0, NEG)
    fv = jnp.where(lane_p < TAGS, fv, NEG_PAD).astype(f32)          # (1, P)

    bps = []
    for t in range(T):
        if t % 2 == 0:
            # fv: row over prev (lanes);  trans[next_sub, prev_lane]
            s = fv + trans                                          # (P, P)
            vmax = jnp.max(s, axis=1, keepdims=True)                # (P, 1)
            bp = (jnp.min(jnp.where(s == vmax, lane_pp, P),
                          axis=1, keepdims=True) if t > 0 else None)
            fv = vmax + feat_col[t]                                 # (P, 1)
        else:
            # fv: column over prev (sublanes);  transT[prev_sub, next_lane]
            s = fv + transT                                         # (P, P)
            vmax = jnp.max(s, axis=0, keepdims=True)                # (1, P)
            bp = jnp.min(jnp.where(s == vmax, sub_pp, P),
                         axis=0, keepdims=True)
            fv = vmax + feats[t:t + 1, :]                           # (1, P)
        bps.append(bp)

    # terminal step: T is even so fv is a row over the last tag (lanes)
    if T % 2 == 0:
        term = fv + trans[STOP_IDX:STOP_IDX + 1, :]                 # (1, P)
        score = jnp.max(term, axis=1, keepdims=True)                # (1, 1)
        best = jnp.min(jnp.where(term == score, lane_p, P),
                       axis=1, keepdims=True)                       # (1, 1) int32
    else:
        term = fv + transT[:, STOP_IDX:STOP_IDX + 1]                # (P, 1)
        score = jnp.max(term, axis=0, keepdims=True)
        best = jnp.min(jnp.where(term == score, sub_p, P),
                       axis=0, keepdims=True)
    score_ref[...] = score

    # backtrack (int32 end-to-end); path emitted as one-hot rows, one store
    rows = [None] * T
    rows[T - 1] = (lane_p == best).astype(jnp.int32)
    for t in range(T - 1, 0, -1):
        bp = bps[t]
        if t % 2 == 0:   # bp is a (P,1) column indexed by next-tag on sublanes
            best = jnp.sum(jnp.where(sub_p == best, bp, 0),
                           axis=0, keepdims=True)
        else:            # bp is a (1,P) row indexed by next-tag on lanes
            best = jnp.sum(jnp.where(lane_p == best, bp, 0),
                           axis=1, keepdims=True)
        rows[t - 1] = (lane_p == best).astype(jnp.int32)
    path_ref[...] = jnp.concatenate(rows, axis=0)                   # (T, P)


# ------------------------- wrapper: parameter packing ------------------------
def _gate_interleave(wT_f, wT_b):
    """Column-reorder so fused gates are [i_f i_b | f_f f_b | g_f g_b | o_f o_b].
    Rows [0:in_f] only feed *_f sub-chunks, rows [in_f:] only feed *_b."""
    nf, nb = wT_f.shape[0], wT_b.shape[0]
    zf = jnp.zeros((nf, HH), jnp.float32)
    zb = jnp.zeros((nb, HH), jnp.float32)
    cols = []
    for g in range(4):
        cf = wT_f[:, g * HH:(g + 1) * HH]
        cb = wT_b[:, g * HH:(g + 1) * HH]
        cols.append(jnp.concatenate(
            [jnp.concatenate([cf, zf], axis=1),
             jnp.concatenate([zb, cb], axis=1)], axis=0))
    return jnp.concatenate(cols, axis=1)            # (nf+nb, 8*HH)


def pack_params(wih_f, whh_f, b_f, wih_b, whh_b, b_b, wtag, btag, trans):
    f32 = jnp.float32
    # slab A: [fused W_ih (2E x 8HH) ; block-diag W_hh (2HH x 8HH) ; bias row]
    wih2 = _gate_interleave(wih_f.T, wih_b.T)
    whh2 = _gate_interleave(whh_f.T, whh_b.T)
    b_il = jnp.concatenate(
        [jnp.concatenate([b_f[g * HH:(g + 1) * HH], b_b[g * HH:(g + 1) * HH]])
         for g in range(4)]).reshape(1, 8 * HH)
    slab_a = jnp.concatenate([wih2, whh2, b_il], axis=0)       # (2E+2HH+1, 8HH)

    # slab B: [hidden2tag^T with bias folded in (AUG x P) ; trans ; trans^T]
    wtagT_pad = jnp.zeros((2 * HH, P), f32).at[:, :TAGS].set(wtag.T)
    btag_pad = jnp.full((P,), NEG_PAD, f32).at[:TAGS].set(btag)
    wtagT_aug = jnp.concatenate(
        [wtagT_pad, btag_pad.reshape(1, P),
         jnp.zeros((AUG - 2 * HH - 1, P), f32)], axis=0)        # (AUG, P)
    trans_pad = jnp.zeros((P, P), f32).at[:TAGS, :TAGS].set(trans)
    slab_b = jnp.concatenate([wtagT_aug, trans_pad, trans_pad.T], axis=0)
    return slab_a, slab_b


def forward(x, wih_f, whh_f, b_f, wih_b, whh_b, b_b, wtag, btag, trans):
    slab_a, slab_b = pack_params(wih_f, whh_f, b_f, wih_b, whh_b, b_b,
                                 wtag, btag, trans)
    x2 = jnp.concatenate([x, x[::-1]], axis=1)                 # (T, 2E)
    vmem = pl.BlockSpec(memory_space=pltpu.MemorySpace.VMEM)
    score, path_oh, feats_pad = pl.pallas_call(
        bilstm_crf_kernel,
        out_shape=(jax.ShapeDtypeStruct((1, 1), jnp.float32),
                   jax.ShapeDtypeStruct((T, P), jnp.int32),
                   jax.ShapeDtypeStruct((T, P), jnp.float32)),
        in_specs=[vmem, vmem, vmem],
        out_specs=(vmem, vmem, vmem),
    )(x2, slab_a, slab_b)
    return score[0, 0], jnp.argmax(path_oh, axis=1), feats_pad[:, :TAGS]


# ----------------------------------- main ------------------------------------
if __name__ == "__main__":
    key = jax.random.PRNGKey(0)
    ks = jax.random.split(key, 12)
    f32 = jnp.float32

    def rnd(k, shape, s=0.1):
        return jax.random.normal(k, shape, dtype=f32) * s

    # stand-in for the BERT encoder output of the sentence (see TODO above)
    x = rnd(ks[0], (T, E), 1.0)

    wih_f = rnd(ks[1], (4 * HH, E));  whh_f = rnd(ks[2], (4 * HH, HH))
    wih_b = rnd(ks[3], (4 * HH, E));  whh_b = rnd(ks[4], (4 * HH, HH))
    b_f = rnd(ks[5], (4 * HH,)) + rnd(ks[6], (4 * HH,))      # b_ih + b_hh (fwd)
    b_b = rnd(ks[7], (4 * HH,)) + rnd(ks[8], (4 * HH,))      # b_ih + b_hh (bwd)
    wtag = rnd(ks[9], (TAGS, HIDDEN)); btag = rnd(ks[10], (TAGS,))
    trans = jax.random.normal(ks[11], (TAGS, TAGS), dtype=f32)
    trans = trans.at[START_IDX, :].set(NEG).at[:, STOP_IDX].set(NEG)

    score, path, feats = forward(x, wih_f, whh_f, b_f, wih_b, whh_b, b_b,
                                 wtag, btag, trans)
    score = jax.block_until_ready(score)
    path = jax.block_until_ready(path)
    feats = jax.block_until_ready(feats)

    # ---------------- pure-JAX / numpy reference check ----------------
    def ref_feats():
        def run_dir(xg, whh, reverse):
            h = jnp.zeros((1, HH), f32); c = jnp.zeros((1, HH), f32)
            outs = [None] * T
            order = range(T - 1, -1, -1) if reverse else range(T)
            for t in order:
                g = xg[t:t + 1] + h @ whh.T
                i = jax.nn.sigmoid(g[:, :HH]); fg = jax.nn.sigmoid(g[:, HH:2 * HH])
                gg = jnp.tanh(g[:, 2 * HH:3 * HH]); o = jax.nn.sigmoid(g[:, 3 * HH:])
                c = fg * c + i * gg
                h = o * jnp.tanh(c)
                outs[t] = h
            return jnp.concatenate(outs, 0)
        xg_f = x @ wih_f.T + b_f
        xg_b = x @ wih_b.T + b_b
        hcat = jnp.concatenate([run_dir(xg_f, whh_f, False),
                                run_dir(xg_b, whh_b, True)], axis=1)
        return hcat @ wtag.T + btag

    def ref_viterbi(feats_np, trans_np):
        fv = np.full(TAGS, NEG, np.float32); fv[START_IDX] = 0.0
        bps = []
        for t in range(T):
            s = fv[None, :] + trans_np           # s[next, prev]
            bp = np.argmax(s, axis=1)
            fv = s[np.arange(TAGS), bp] + feats_np[t]
            bps.append(bp)
        term = fv + trans_np[STOP_IDX]
        best = int(np.argmax(term))
        sc = float(term[best])
        p = [best]
        for bp in reversed(bps):
            best = int(bp[best])
            p.append(best)
        assert p.pop() == START_IDX
        p.reverse()
        return sc, p

    np.testing.assert_allclose(np.asarray(feats), np.asarray(ref_feats()),
                               rtol=2e-3, atol=2e-3)
    ref_sc, ref_path = ref_viterbi(np.asarray(feats), np.asarray(trans))
    assert list(np.asarray(path)) == ref_path
    np.testing.assert_allclose(float(score), ref_sc, rtol=1e-4, atol=1e-3)

    print("KERNEL_OK")
</pallas_src>

<mosaic_0001>
module attributes {stable_mosaic.version = 11 : i64} {
  func.func @bilstm_crf_kernel(%arg0: memref<8x64xf32, #tpu.memory_space<vmem>>, %arg1: memref<97x128xf32, #tpu.memory_space<vmem>>, %arg2: memref<72x16xf32, #tpu.memory_space<vmem>>, %arg3: memref<1x1xf32, #tpu.memory_space<vmem>>, %arg4: memref<8x16xi32, #tpu.memory_space<vmem>>, %arg5: memref<8x16xf32, #tpu.memory_space<vmem>>) attributes {dimension_semantics = [], scalar_prefetch = 0 : i64, scratch_operands = 0 : i64, tpu.core_type = #tpu.core_type<tc>} {
    %c0 = arith.constant 0 : index
    %c0_0 = arith.constant 0 : index
    %0 = vector.load %arg1[%c0, %c0_0] : memref<97x128xf32, #tpu.memory_space<vmem>>, vector<64x128xf32>
    %c64 = arith.constant 64 : index
    %c0_1 = arith.constant 0 : index
    %1 = vector.load %arg1[%c64, %c0_1] : memref<97x128xf32, #tpu.memory_space<vmem>>, vector<32x128xf32>
    %c96 = arith.constant 96 : index
    %c0_2 = arith.constant 0 : index
    %2 = vector.load %arg1[%c96, %c0_2] : memref<97x128xf32, #tpu.memory_space<vmem>>, vector<1x128xf32>
    %c0_3 = arith.constant 0 : index
    %c0_4 = arith.constant 0 : index
    %3 = vector.load %arg2[%c0_3, %c0_4] : memref<72x16xf32, #tpu.memory_space<vmem>>, vector<40x16xf32>
    %c40 = arith.constant 40 : index
    %c0_5 = arith.constant 0 : index
    %4 = vector.load %arg2[%c40, %c0_5] : memref<72x16xf32, #tpu.memory_space<vmem>>, vector<16x16xf32>
    %c56 = arith.constant 56 : index
    %c0_6 = arith.constant 0 : index
    %5 = vector.load %arg2[%c56, %c0_6] : memref<72x16xf32, #tpu.memory_space<vmem>>, vector<16x16xf32>
    %c0_7 = arith.constant 0 : index
    %c0_8 = arith.constant 0 : index
    %6 = vector.load %arg0[%c0_7, %c0_8] : memref<8x64xf32, #tpu.memory_space<vmem>>, vector<8x64xf32>
    %cst = arith.constant dense<0.000000e+00> : vector<8x128xf32>
    %7 = tpu.matmul %6, %0, %cst {dimension_numbers = #tpu.dot_dimension_numbers<[1], [0], [0], [1], [0, 0, 1, 1], [], []>} : vector<8x64xf32>, vector<64x128xf32>, vector<8x128xf32> -> vector<8x128xf32>
    %8 = vector.broadcast %2 : vector<1x128xf32> to vector<8x128xf32>
    %9 = arith.addf %7, %8 : vector<8x128xf32>
    %cst_9 = arith.constant 0.000000e+00 : f32
    %10 = vector.broadcast %cst_9 : f32 to vector<1x32xf32>
    %cst_10 = arith.constant 0.000000e+00 : f32
    %11 = vector.broadcast %cst_10 : f32 to vector<1x32xf32>
    %12 = vector.extract_strided_slice %9 {offsets = [0, 0], sizes = [1, 128], strides = [1, 1]} : vector<8x128xf32> to vector<1x128xf32>
    %cst_11 = arith.constant dense<0.000000e+00> : vector<1x128xf32>
    %13 = tpu.matmul %10, %1, %cst_11 {dimension_numbers = #tpu.dot_dimension_numbers<[1], [0], [0], [1], [0, 0, 1, 1], [], []>} : vector<1x32xf32>, vector<32x128xf32>, vector<1x128xf32> -> vector<1x128xf32>
    %14 = arith.addf %12, %13 : vector<1x128xf32>
    %15 = vector.extract_strided_slice %14 {offsets = [0, 0], sizes = [1, 32], strides = [1, 1]} : vector<1x128xf32> to vector<1x32xf32>
    %16 = arith.negf %15 : vector<1x32xf32>
    %17 = math.exp %16 : vector<1x32xf32>
    %cst_12 = arith.constant 1.000000e+00 : f32
    %18 = vector.broadcast %cst_12 : f32 to vector<1x32xf32>
    %19 = arith.addf %18, %17 : vector<1x32xf32>
    %20 = arith.divf %18, %19 : vector<1x32xf32>
    %21 = vector.extract_strided_slice %14 {offsets = [0, 32], sizes = [1, 32], strides = [1, 1]} : vector<1x128xf32> to vector<1x32xf32>
    %22 = arith.negf %21 : vector<1x32xf32>
    %23 = math.exp %22 : vector<1x32xf32>
    %cst_13 = arith.constant 1.000000e+00 : f32
    %24 = vector.broadcast %cst_13 : f32 to vector<1x32xf32>
    %25 = arith.addf %24, %23 : vector<1x32xf32>
    %26 = arith.divf %24, %25 : vector<1x32xf32>
    %27 = vector.extract_strided_slice %14 {offsets = [0, 64], sizes = [1, 32], strides = [1, 1]} : vector<1x128xf32> to vector<1x32xf32>
    %28 = math.tanh %27 : vector<1x32xf32>
    %29 = vector.extract_strided_slice %14 {offsets = [0, 96], sizes = [1, 32], strides = [1, 1]} : vector<1x128xf32> to vector<1x32xf32>
    %30 = arith.negf %29 : vector<1x32xf32>
    %31 = math.exp %30 : vector<1x32xf32>
    %cst_14 = arith.constant 1.000000e+00 : f32
    %32 = vector.broadcast %cst_14 : f32 to vector<1x32xf32>
    %33 = arith.addf %32, %31 : vector<1x32xf32>
    %34 = arith.divf %32, %33 : vector<1x32xf32>
    %35 = arith.mulf %26, %11 : vector<1x32xf32>
    %36 = arith.mulf %20, %28 : vector<1x32xf32>
    %37 = arith.addf %35, %36 : vector<1x32xf32>
    %38 = math.tanh %37 : vector<1x32xf32>
    %39 = arith.mulf %34, %38 : vector<1x32xf32>
    %40 = vector.extract_strided_slice %9 {offsets = [1, 0], sizes = [1, 128], strides = [1, 1]} : vector<8x128xf32> to vector<1x128xf32>
    %cst_15 = arith.constant dense<0.000000e+00> : vector<1x128xf32>
    %41 = tpu.matmul %39, %1, %cst_15 {dimension_numbers = #tpu.dot_dimension_numbers<[1], [0], [0], [1], [0, 0, 1, 1], [], []>} : vector<1x32xf32>, vector<32x128xf32>, vector<1x128xf32> -> vector<1x128xf32>
    %42 = arith.addf %40, %41 : vector<1x128xf32>
    %43 = vector.extract_strided_slice %42 {offsets = [0, 0], sizes = [1, 32], strides = [1, 1]} : vector<1x128xf32> to vector<1x32xf32>
    %44 = arith.negf %43 : vector<1x32xf32>
    %45 = math.exp %44 : vector<1x32xf32>
    %cst_16 = arith.constant 1.000000e+00 : f32
    %46 = vector.broadcast %cst_16 : f32 to vector<1x32xf32>
    %47 = arith.addf %46, %45 : vector<1x32xf32>
    %48 = arith.divf %46, %47 : vector<1x32xf32>
    %49 = vector.extract_strided_slice %42 {offsets = [0, 32], sizes = [1, 32], strides = [1, 1]} : vector<1x128xf32> to vector<1x32xf32>
    %50 = arith.negf %49 : vector<1x32xf32>
    %51 = math.exp %50 : vector<1x32xf32>
    %cst_17 = arith.constant 1.000000e+00 : f32
    %52 = vector.broadcast %cst_17 : f32 to vector<1x32xf32>
    %53 = arith.addf %52, %51 : vector<1x32xf32>
    %54 = arith.divf %52, %53 : vector<1x32xf32>
    %55 = vector.extract_strided_slice %42 {offsets = [0, 64], sizes = [1, 32], strides = [1, 1]} : vector<1x128xf32> to vector<1x32xf32>
    %56 = math.tanh %55 : vector<1x32xf32>
    %57 = vector.extract_strided_slice %42 {offsets = [0, 96], sizes = [1, 32], strides = [1, 1]} : vector<1x128xf32> to vector<1x32xf32>
    %58 = arith.negf %57 : vector<1x32xf32>
    %59 = math.exp %58 : vector<1x32xf32>
    %cst_18 = arith.constant 1.000000e+00 : f32
    %60 = vector.broadcast %cst_18 : f32 to vector<1x32xf32>
    %61 = arith.addf %60, %59 : vector<1x32xf32>
    %62 = arith.divf %60, %61 : vector<1x32xf32>
    %63 = arith.mulf %54, %37 : vector<1x32xf32>
    %64 = arith.mulf %48, %56 : vector<1x32xf32>
    %65 = arith.addf %63, %64 : vector<1x32xf32>
    %66 = math.tanh %65 : vector<1x32xf32>
    %67 = arith.mulf %62, %66 : vector<1x32xf32>
    %68 = vector.extract_strided_slice %9 {offsets = [2, 0], sizes = [1, 128], strides = [1, 1]} : vector<8x128xf32> to vector<1x128xf32>
    %cst_19 = arith.constant dense<0.000000e+00> : vector<1x128xf32>
    %69 = tpu.matmul %67, %1, %cst_19 {dimension_numbers = #tpu.dot_dimension_numbers<[1], [0], [0], [1], [0, 0, 1, 1], [], []>} : vector<1x32xf32>, vector<32x128xf32>, vector<1x128xf32> -> vector<1x128xf32>
    %70 = arith.addf %68, %69 : vector<1x128xf32>
    %71 = vector.extract_strided_slice %70 {offsets = [0, 0], sizes = [1, 32], strides = [1, 1]} : vector<1x128xf32> to vector<1x32xf32>
    %72 = arith.negf %71 : vector<1x32xf32>
    %73 = math.exp %72 : vector<1x32xf32>
    %cst_20 = arith.constant 1.000000e+00 : f32
    %74 = vector.broadcast %cst_20 : f32 to vector<1x32xf32>
    %75 = arith.addf %74, %73 : vector<1x32xf32>
    %76 = arith.divf %74, %75 : vector<1x32xf32>
    %77 = vector.extract_strided_slice %70 {offsets = [0, 32], sizes = [1, 32], strides = [1, 1]} : vector<1x128xf32> to vector<1x32xf32>
    %78 = arith.negf %77 : vector<1x32xf32>
    %79 = math.exp %78 : vector<1x32xf32>
    %cst_21 = arith.constant 1.000000e+00 : f32
    %80 = vector.broadcast %cst_21 : f32 to vector<1x32xf32>
    %81 = arith.addf %80, %79 : vector<1x32xf32>
    %82 = arith.divf %80, %81 : vector<1x32xf32>
    %83 = vector.extract_strided_slice %70 {offsets = [0, 64], sizes = [1, 32], strides = [1, 1]} : vector<1x128xf32> to vector<1x32xf32>
    %84 = math.tanh %83 : vector<1x32xf32>
    %85 = vector.extract_strided_slice %70 {offsets = [0, 96], sizes = [1, 32], strides = [1, 1]} : vector<1x128xf32> to vector<1x32xf32>
    %86 = arith.negf %85 : vector<1x32xf32>
    %87 = math.exp %86 : vector<1x32xf32>
    %cst_22 = arith.constant 1.000000e+00 : f32
    %88 = vector.broadcast %cst_22 : f32 to vector<1x32xf32>
    %89 = arith.addf %88, %87 : vector<1x32xf32>
    %90 = arith.divf %88, %89 : vector<1x32xf32>
    %91 = arith.mulf %82, %65 : vector<1x32xf32>
    %92 = arith.mulf %76, %84 : vector<1x32xf32>
    %93 = arith.addf %91, %92 : vector<1x32xf32>
    %94 = math.tanh %93 : vector<1x32xf32>
    %95 = arith.mulf %90, %94 : vector<1x32xf32>
    %96 = vector.extract_strided_slice %9 {offsets = [3, 0], sizes = [1, 128], strides = [1, 1]} : vector<8x128xf32> to vector<1x128xf32>
    %cst_23 = arith.constant dense<0.000000e+00> : vector<1x128xf32>
    %97 = tpu.matmul %95, %1, %cst_23 {dimension_numbers = #tpu.dot_dimension_numbers<[1], [0], [0], [1], [0, 0, 1, 1], [], []>} : vector<1x32xf32>, vector<32x128xf32>, vector<1x128xf32> -> vector<1x128xf32>
    %98 = arith.addf %96, %97 : vector<1x128xf32>
    %99 = vector.extract_strided_slice %98 {offsets = [0, 0], sizes = [1, 32], strides = [1, 1]} : vector<1x128xf32> to vector<1x32xf32>
    %100 = arith.negf %99 : vector<1x32xf32>
    %101 = math.exp %100 : vector<1x32xf32>
    %cst_24 = arith.constant 1.000000e+00 : f32
    %102 = vector.broadcast %cst_24 : f32 to vector<1x32xf32>
    %103 = arith.addf %102, %101 : vector<1x32xf32>
    %104 = arith.divf %102, %103 : vector<1x32xf32>
    %105 = vector.extract_strided_slice %98 {offsets = [0, 32], sizes = [1, 32], strides = [1, 1]} : vector<1x128xf32> to vector<1x32xf32>
    %106 = arith.negf %105 : vector<1x32xf32>
    %107 = math.exp %106 : vector<1x32xf32>
    %cst_25 = arith.constant 1.000000e+00 : f32
    %108 = vector.broadcast %cst_25 : f32 to vector<1x32xf32>
    %109 = arith.addf %108, %107 : vector<1x32xf32>
    %110 = arith.divf %108, %109 : vector<1x32xf32>
    %111 = vector.extract_strided_slice %98 {offsets = [0, 64], sizes = [1, 32], strides = [1, 1]} : vector<1x128xf32> to vector<1x32xf32>
    %112 = math.tanh %111 : vector<1x32xf32>
    %113 = vector.extract_strided_slice %98 {offsets = [0, 96], sizes = [1, 32], strides = [1, 1]} : vector<1x128xf32> to vector<1x32xf32>
    %114 = arith.negf %113 : vector<1x32xf32>
    %115 = math.exp %114 : vector<1x32xf32>
    %cst_26 = arith.constant 1.000000e+00 : f32
    %116 = vector.broadcast %cst_26 : f32 to vector<1x32xf32>
    %117 = arith.addf %116, %115 : vector<1x32xf32>
    %118 = arith.divf %116, %117 : vector<1x32xf32>
    %119 = arith.mulf %110, %93 : vector<1x32xf32>
    %120 = arith.mulf %104, %112 : vector<1x32xf32>
    %121 = arith.addf %119, %120 : vector<1x32xf32>
    %122 = math.tanh %121 : vector<1x32xf32>
    %123 = arith.mulf %118, %122 : vector<1x32xf32>
    %124 = vector.extract_strided_slice %9 {offsets = [4, 0], sizes = [1, 128], strides = [1, 1]} : vector<8x128xf32> to vector<1x128xf32>
    %cst_27 = arith.constant dense<0.000000e+00> : vector<1x128xf32>
    %125 = tpu.matmul %123, %1, %cst_27 {dimension_numbers = #tpu.dot_dimension_numbers<[1], [0], [0], [1], [0, 0, 1, 1], [], []>} : vector<1x32xf32>, vector<32x128xf32>, vector<1x128xf32> -> vector<1x128xf32>
    %126 = arith.addf %124, %125 : vector<1x128xf32>
    %127 = vector.extract_strided_slice %126 {offsets = [0, 0], sizes = [1, 32], strides = [1, 1]} : vector<1x128xf32> to vector<1x32xf32>
    %128 = arith.negf %127 : vector<1x32xf32>
    %129 = math.exp %128 : vector<1x32xf32>
    %cst_28 = arith.constant 1.000000e+00 : f32
    %130 = vector.broadcast %cst_28 : f32 to vector<1x32xf32>
    %131 = arith.addf %130, %129 : vector<1x32xf32>
    %132 = arith.divf %130, %131 : vector<1x32xf32>
    %133 = vector.extract_strided_slice %126 {offsets = [0, 32], sizes = [1, 32], strides = [1, 1]} : vector<1x128xf32> to vector<1x32xf32>
    %134 = arith.negf %133 : vector<1x32xf32>
    %135 = math.exp %134 : vector<1x32xf32>
    %cst_29 = arith.constant 1.000000e+00 : f32
    %136 = vector.broadcast %cst_29 : f32 to vector<1x32xf32>
    %137 = arith.addf %136, %135 : vector<1x32xf32>
    %138 = arith.divf %136, %137 : vector<1x32xf32>
    %139 = vector.extract_strided_slice %126 {offsets = [0, 64], sizes = [1, 32], strides = [1, 1]} : vector<1x128xf32> to vector<1x32xf32>
    %140 = math.tanh %139 : vector<1x32xf32>
    %141 = vector.extract_strided_slice %126 {offsets = [0, 96], sizes = [1, 32], strides = [1, 1]} : vector<1x128xf32> to vector<1x32xf32>
    %142 = arith.negf %141 : vector<1x32xf32>
    %143 = math.exp %142 : vector<1x32xf32>
    %cst_30 = arith.constant 1.000000e+00 : f32
    %144 = vector.broadcast %cst_30 : f32 to vector<1x32xf32>
    %145 = arith.addf %144, %143 : vector<1x32xf32>
    %146 = arith.divf %144, %145 : vector<1x32xf32>
    %147 = arith.mulf %138, %121 : vector<1x32xf32>
    %148 = arith.mulf %132, %140 : vector<1x32xf32>
    %149 = arith.addf %147, %148 : vector<1x32xf32>
    %150 = math.tanh %149 : vector<1x32xf32>
    %151 = arith.mulf %146, %150 : vector<1x32xf32>
    %152 = vector.extract_strided_slice %9 {offsets = [5, 0], sizes = [1, 128], strides = [1, 1]} : vector<8x128xf32> to vector<1x128xf32>
    %cst_31 = arith.constant dense<0.000000e+00> : vector<1x128xf32>
    %153 = tpu.matmul %151, %1, %cst_31 {dimension_numbers = #tpu.dot_dimension_numbers<[1], [0], [0], [1], [0, 0, 1, 1], [], []>} : vector<1x32xf32>, vector<32x128xf32>, vector<1x128xf32> -> vector<1x128xf32>
    %154 = arith.addf %152, %153 : vector<1x128xf32>
    %155 = vector.extract_strided_slice %154 {offsets = [0, 0], sizes = [1, 32], strides = [1, 1]} : vector<1x128xf32> to vector<1x32xf32>
    %156 = arith.negf %155 : vector<1x32xf32>
    %157 = math.exp %156 : vector<1x32xf32>
    %cst_32 = arith.constant 1.000000e+00 : f32
    %158 = vector.broadcast %cst_32 : f32 to vector<1x32xf32>
    %159 = arith.addf %158, %157 : vector<1x32xf32>
    %160 = arith.divf %158, %159 : vector<1x32xf32>
    %161 = vector.extract_strided_slice %154 {offsets = [0, 32], sizes = [1, 32], strides = [1, 1]} : vector<1x128xf32> to vector<1x32xf32>
    %162 = arith.negf %161 : vector<1x32xf32>
    %163 = math.exp %162 : vector<1x32xf32>
    %cst_33 = arith.constant 1.000000e+00 : f32
    %164 = vector.broadcast %cst_33 : f32 to vector<1x32xf32>
    %165 = arith.addf %164, %163 : vector<1x32xf32>
    %166 = arith.divf %164, %165 : vector<1x32xf32>
    %167 = vector.extract_strided_slice %154 {offsets = [0, 64], sizes = [1, 32], strides = [1, 1]} : vector<1x128xf32> to vector<1x32xf32>
    %168 = math.tanh %167 : vector<1x32xf32>
    %169 = vector.extract_strided_slice %154 {offsets = [0, 96], sizes = [1, 32], strides = [1, 1]} : vector<1x128xf32> to vector<1x32xf32>
    %170 = arith.negf %169 : vector<1x32xf32>
    %171 = math.exp %170 : vector<1x32xf32>
    %cst_34 = arith.constant 1.000000e+00 : f32
    %172 = vector.broadcast %cst_34 : f32 to vector<1x32xf32>
    %173 = arith.addf %172, %171 : vector<1x32xf32>
    %174 = arith.divf %172, %173 : vector<1x32xf32>
    %175 = arith.mulf %166, %149 : vector<1x32xf32>
    %176 = arith.mulf %160, %168 : vector<1x32xf32>
    %177 = arith.addf %175, %176 : vector<1x32xf32>
    %178 = math.tanh %177 : vector<1x32xf32>
    %179 = arith.mulf %174, %178 : vector<1x32xf32>
    %180 = vector.extract_strided_slice %9 {offsets = [6, 0], sizes = [1, 128], strides = [1, 1]} : vector<8x128xf32> to vector<1x128xf32>
    %cst_35 = arith.constant dense<0.000000e+00> : vector<1x128xf32>
    %181 = tpu.matmul %179, %1, %cst_35 {dimension_numbers = #tpu.dot_dimension_numbers<[1], [0], [0], [1], [0, 0, 1, 1], [], []>} : vector<1x32xf32>, vector<32x128xf32>, vector<1x128xf32> -> vector<1x128xf32>
    %182 = arith.addf %180, %181 : vector<1x128xf32>
    %183 = vector.extract_strided_slice %182 {offsets = [0, 0], sizes = [1, 32], strides = [1, 1]} : vector<1x128xf32> to vector<1x32xf32>
    %184 = arith.negf %183 : vector<1x32xf32>
    %185 = math.exp %184 : vector<1x32xf32>
    %cst_36 = arith.constant 1.000000e+00 : f32
    %186 = vector.broadcast %cst_36 : f32 to vector<1x32xf32>
    %187 = arith.addf %186, %185 : vector<1x32xf32>
    %188 = arith.divf %186, %187 : vector<1x32xf32>
    %189 = vector.extract_strided_slice %182 {offsets = [0, 32], sizes = [1, 32], strides = [1, 1]} : vector<1x128xf32> to vector<1x32xf32>
    %190 = arith.negf %189 : vector<1x32xf32>
    %191 = math.exp %190 : vector<1x32xf32>
    %cst_37 = arith.constant 1.000000e+00 : f32
    %192 = vector.broadcast %cst_37 : f32 to vector<1x32xf32>
    %193 = arith.addf %192, %191 : vector<1x32xf32>
    %194 = arith.divf %192, %193 : vector<1x32xf32>
    %195 = vector.extract_strided_slice %182 {offsets = [0, 64], sizes = [1, 32], strides = [1, 1]} : vector<1x128xf32> to vector<1x32xf32>
    %196 = math.tanh %195 : vector<1x32xf32>
    %197 = vector.extract_strided_slice %182 {offsets = [0, 96], sizes = [1, 32], strides = [1, 1]} : vector<1x128xf32> to vector<1x32xf32>
    %198 = arith.negf %197 : vector<1x32xf32>
    %199 = math.exp %198 : vector<1x32xf32>
    %cst_38 = arith.constant 1.000000e+00 : f32
    %200 = vector.broadcast %cst_38 : f32 to vector<1x32xf32>
    %201 = arith.addf %200, %199 : vector<1x32xf32>
    %202 = arith.divf %200, %201 : vector<1x32xf32>
    %203 = arith.mulf %194, %177 : vector<1x32xf32>
    %204 = arith.mulf %188, %196 : vector<1x32xf32>
    %205 = arith.addf %203, %204 : vector<1x32xf32>
    %206 = math.tanh %205 : vector<1x32xf32>
    %207 = arith.mulf %202, %206 : vector<1x32xf32>
    %208 = vector.extract_strided_slice %9 {offsets = [7, 0], sizes = [1, 128], strides = [1, 1]} : vector<8x128xf32> to vector<1x128xf32>
    %cst_39 = arith.constant dense<0.000000e+00> : vector<1x128xf32>
    %209 = tpu.matmul %207, %1, %cst_39 {dimension_numbers = #tpu.dot_dimension_numbers<[1], [0], [0], [1], [0, 0, 1, 1], [], []>} : vector<1x32xf32>, vector<32x128xf32>, vector<1x128xf32> -> vector<1x128xf32>
    %210 = arith.addf %208, %209 : vector<1x128xf32>
    %211 = vector.extract_strided_slice %210 {offsets = [0, 0], sizes = [1, 32], strides = [1, 1]} : vector<1x128xf32> to vector<1x32xf32>
    %212 = arith.negf %211 : vector<1x32xf32>
    %213 = math.exp %212 : vector<1x32xf32>
    %cst_40 = arith.constant 1.000000e+00 : f32
    %214 = vector.broadcast %cst_40 : f32 to vector<1x32xf32>
    %215 = arith.addf %214, %213 : vector<1x32xf32>
    %216 = arith.divf %214, %215 : vector<1x32xf32>
    %217 = vector.extract_strided_slice %210 {offsets = [0, 32], sizes = [1, 32], strides = [1, 1]} : vector<1x128xf32> to vector<1x32xf32>
    %218 = arith.negf %217 : vector<1x32xf32>
    %219 = math.exp %218 : vector<1x32xf32>
    %cst_41 = arith.constant 1.000000e+00 : f32
    %220 = vector.broadcast %cst_41 : f32 to vector<1x32xf32>
    %221 = arith.addf %220, %219 : vector<1x32xf32>
    %222 = arith.divf %220, %221 : vector<1x32xf32>
    %223 = vector.extract_strided_slice %210 {offsets = [0, 64], sizes = [1, 32], strides = [1, 1]} : vector<1x128xf32> to vector<1x32xf32>
    %224 = math.tanh %223 : vector<1x32xf32>
    %225 = vector.extract_strided_slice %210 {offsets = [0, 96], sizes = [1, 32], strides = [1, 1]} : vector<1x128xf32> to vector<1x32xf32>
    %226 = arith.negf %225 : vector<1x32xf32>
    %227 = math.exp %226 : vector<1x32xf32>
    %cst_42 = arith.constant 1.000000e+00 : f32
    %228 = vector.broadcast %cst_42 : f32 to vector<1x32xf32>
    %229 = arith.addf %228, %227 : vector<1x32xf32>
    %230 = arith.divf %228, %229 : vector<1x32xf32>
    %231 = arith.mulf %222, %205 : vector<1x32xf32>
    %232 = arith.mulf %216, %224 : vector<1x32xf32>
    %233 = arith.addf %231, %232 : vector<1x32xf32>
    %234 = math.tanh %233 : vector<1x32xf32>
    %235 = arith.mulf %230, %234 : vector<1x32xf32>
    %236 = tpu.iota {dimensions = array<i32: 1>} : vector<1x32xi32>
    %237 = tpu.concatenate %39, %67, %95, %123, %151, %179, %207, %235 in 0 : vector<1x32xf32>, vector<1x32xf32>, vector<1x32xf32>, vector<1x32xf32>, vector<1x32xf32>, vector<1x32xf32>, vector<1x32xf32>, vector<1x32xf32> -> vector<8x32xf32>
    %238 = tpu.concatenate %235, %207, %179, %151, %123, %95, %67, %39 in 0 : vector<1x32xf32>, vector<1x32xf32>, vector<1x32xf32>, vector<1x32xf32>, vector<1x32xf32>, vector<1x32xf32>, vector<1x32xf32>, vector<1x32xf32> -> vector<8x32xf32>
    %c16_i32 = arith.constant 16 : i32
    %239 = vector.broadcast %c16_i32 : i32 to vector<1x32xi32>
    %240 = arith.cmpi slt, %236, %239 : vector<1x32xi32>
    %241 = vector.shape_cast %240 : vector<1x32xi1> to vector<1x32xi1>
    %242 = vector.broadcast %241 : vector<1x32xi1> to vector<8x32xi1>
    %243 = arith.select %242, %237, %238 : vector<8x32xi1>, vector<8x32xf32>
    %cst_43 = arith.constant 1.000000e+00 : f32
    %244 = vector.broadcast %cst_43 : f32 to vector<8x8xf32>
    %245 = tpu.concatenate %243, %244 in 1 : vector<8x32xf32>, vector<8x8xf32> -> vector<8x40xf32>
    %cst_44 = arith.constant dense<0.000000e+00> : vector<8x16xf32>
    %246 = tpu.matmul %245, %3, %cst_44 {dimension_numbers = #tpu.dot_dimension_numbers<[1], [0], [0], [1], [0, 0, 1, 1], [], []>} : vector<8x40xf32>, vector<40x16xf32>, vector<8x16xf32> -> vector<8x16xf32>
    %c0_45 = arith.constant 0 : index
    %c0_46 = arith.constant 0 : index
    %247 = vector.load %arg5[%c0_45, %c0_46] : memref<8x16xf32, #tpu.memory_space<vmem>>, vector<8x16xf32>
    tpu.vector_store %arg5[%c0_45, %c0_46], %246 {strides = array<i32>} : memref<8x16xf32, #tpu.memory_space<vmem>>, vector<8x16xf32>,
    %248 = tpu.iota {dimensions = array<i32: 1>} : vector<1x16xi32>
    %249 = tpu.iota {dimensions = array<i32: 0>} : vector<16x1xi32>
    %250 = tpu.iota {dimensions = array<i32: 1>} : vector<16x16xi32>
    %251 = tpu.iota {dimensions = array<i32: 0>} : vector<16x16xi32>
    %252 = arith.cmpi eq, %250, %251 : vector<16x16xi32>
    %253 = vector.extract_strided_slice %246 {offsets = [0, 0], sizes = [1, 16], strides = [1, 1]} : vector<8x16xf32> to vector<1x16xf32>
    %254 = vector.shape_cast %253 : vector<1x16xf32> to vector<1x16xf32>
    %255 = vector.broadcast %254 : vector<1x16xf32> to vector<16x16xf32>
    %cst_47 = arith.constant 0xFF800000 : f32
    %256 = vector.broadcast %cst_47 : f32 to vector<16x16xf32>
    %257 = arith.select %252, %255, %256 : vector<16x16xi1>, vector<16x16xf32>
    %cst_48 = arith.constant dense<0xFF800000> : vector<16xf32>
    %258 = vector.multi_reduction <maximumf>, %257, %cst_48 [1] : vector<16x16xf32> to vector<16xf32>
    %259 = vector.shape_cast %258 : vector<16xf32> to vector<16x1xf32>
    %260 = vector.extract_strided_slice %246 {offsets = [2, 0], sizes = [1, 16], strides = [1, 1]} : vector<8x16xf32> to vector<1x16xf32>
    %261 = vector.shape_cast %260 : vector<1x16xf32> to vector<1x16xf32>
    %262 = vector.broadcast %261 : vector<1x16xf32> to vector<16x16xf32>
    %cst_49 = arith.constant 0xFF800000 : f32
    %263 = vector.broadcast %cst_49 : f32 to vector<16x16xf32>
    %264 = arith.select %252, %262, %263 : vector<16x16xi1>, vector<16x16xf32>
    %cst_50 = arith.constant dense<0xFF800000> : vector<16xf32>
    %265 = vector.multi_reduction <maximumf>, %264, %cst_50 [1] : vector<16x16xf32> to vector<16xf32>
    %266 = vector.shape_cast %265 : vector<16xf32> to vector<16x1xf32>
    %267 = vector.extract_strided_slice %246 {offsets = [4, 0], sizes = [1, 16], strides = [1, 1]} : vector<8x16xf32> to vector<1x16xf32>
    %268 = vector.shape_cast %267 : vector<1x16xf32> to vector<1x16xf32>
    %269 = vector.broadcast %268 : vector<1x16xf32> to vector<16x16xf32>
    %cst_51 = arith.constant 0xFF800000 : f32
    %270 = vector.broadcast %cst_51 : f32 to vector<16x16xf32>
    %271 = arith.select %252, %269, %270 : vector<16x16xi1>, vector<16x16xf32>
    %cst_52 = arith.constant dense<0xFF800000> : vector<16xf32>
    %272 = vector.multi_reduction <maximumf>, %271, %cst_52 [1] : vector<16x16xf32> to vector<16xf32>
    %273 = vector.shape_cast %272 : vector<16xf32> to vector<16x1xf32>
    %274 = vector.extract_strided_slice %246 {offsets = [6, 0], sizes = [1, 16], strides = [1, 1]} : vector<8x16xf32> to vector<1x16xf32>
    %275 = vector.shape_cast %274 : vector<1x16xf32> to vector<1x16xf32>
    %276 = vector.broadcast %275 : vector<1x16xf32> to vector<16x16xf32>
    %cst_53 = arith.constant 0xFF800000 : f32
    %277 = vector.broadcast %cst_53 : f32 to vector<16x16xf32>
    %278 = arith.select %252, %276, %277 : vector<16x16xi1>, vector<16x16xf32>
    %cst_54 = arith.constant dense<0xFF800000> : vector<16xf32>
    %279 = vector.multi_reduction <maximumf>, %278, %cst_54 [1] : vector<16x16xf32> to vector<16xf32>
    %280 = vector.shape_cast %279 : vector<16xf32> to vector<16x1xf32>
    %c7_i32 = arith.constant 7 : i32
    %281 = vector.broadcast %c7_i32 : i32 to vector<1x16xi32>
    %282 = arith.cmpi eq, %248, %281 : vector<1x16xi32>
    %cst_55 = arith.constant 0.000000e+00 : f32
    %cst_56 = arith.constant -1.000000e+04 : f32
    %283 = vector.broadcast %cst_55 : f32 to vector<1x16xf32>
    %284 = vector.broadcast %cst_56 : f32 to vector<1x16xf32>
    %285 = arith.select %282, %283, %284 : vector<1x16xi1>, vector<1x16xf32>
    %c9_i32 = arith.constant 9 : i32
    %286 = vector.broadcast %c9_i32 : i32 to vector<1x16xi32>
    %287 = arith.cmpi slt, %248, %286 : vector<1x16xi32>
    %cst_57 = arith.constant -1.000000e+30 : f32
    %288 = vector.broadcast %cst_57 : f32 to vector<1x16xf32>
    %289 = arith.select %287, %285, %288 : vector<1x16xi1>, vector<1x16xf32>
    %290 = vector.broadcast %289 : vector<1x16xf32> to vector<16x16xf32>
    %291 = arith.addf %290, %4 : vector<16x16xf32>
    %cst_58 = arith.constant dense<0xFF800000> : vector<16xf32>
    %292 = vector.multi_reduction <maximumf>, %291, %cst_58 [1] : vector<16x16xf32> to vector<16xf32>
    %293 = vector.shape_cast %292 : vector<16xf32> to vector<16x1xf32>
    %294 = arith.addf %293, %259 : vector<16x1xf32>
    %295 = vector.broadcast %294 : vector<16x1xf32> to vector<16x16xf32>
    %296 = arith.addf %295, %5 : vector<16x16xf32>
    %cst_59 = arith.constant dense<0xFF800000> : vector<16xf32>
    %297 = vector.multi_reduction <maximumf>, %296, %cst_59 [0] : vector<16x16xf32> to vector<16xf32>
    %298 = vector.shape_cast %297 : vector<16xf32> to vector<1x16xf32>
    %299 = vector.broadcast %298 : vector<1x16xf32> to vector<16x16xf32>
    %300 = arith.cmpf oeq, %296, %299 : vector<16x16xf32>
    %c16_i32_60 = arith.constant 16 : i32
    %301 = vector.broadcast %c16_i32_60 : i32 to vector<16x16xi32>
    %302 = arith.select %300, %251, %301 : vector<16x16xi1>, vector<16x16xi32>
    %cst_61 = arith.constant dense<2147483647> : vector<16xi32>
    %303 = vector.multi_reduction <minsi>, %302, %cst_61 [0] : vector<16x16xi32> to vector<16xi32>
    %304 = vector.shape_cast %303 : vector<16xi32> to vector<1x16xi32>
    %305 = vector.extract_strided_slice %246 {offsets = [1, 0], sizes = [1, 16], strides = [1, 1]} : vector<8x16xf32> to vector<1x16xf32>
    %306 = arith.addf %298, %305 : vector<1x16xf32>
    %307 = vector.broadcast %306 : vector<1x16xf32> to vector<16x16xf32>
    %308 = arith.addf %307, %4 : vector<16x16xf32>
    %cst_62 = arith.constant dense<0xFF800000> : vector<16xf32>
    %309 = vector.multi_reduction <maximumf>, %308, %cst_62 [1] : vector<16x16xf32> to vector<16xf32>
    %310 = vector.shape_cast %309 : vector<16xf32> to vector<16x1xf32>
    %311 = vector.broadcast %310 : vector<16x1xf32> to vector<16x16xf32>
    %312 = arith.cmpf oeq, %308, %311 : vector<16x16xf32>
    %c16_i32_63 = arith.constant 16 : i32
    %313 = vector.broadcast %c16_i32_63 : i32 to vector<16x16xi32>
    %314 = arith.select %312, %250, %313 : vector<16x16xi1>, vector<16x16xi32>
    %cst_64 = arith.constant dense<2147483647> : vector<16xi32>
    %315 = vector.multi_reduction <minsi>, %314, %cst_64 [1] : vector<16x16xi32> to vector<16xi32>
    %316 = vector.shape_cast %315 : vector<16xi32> to vector<16x1xi32>
    %317 = arith.addf %310, %266 : vector<16x1xf32>
    %318 = vector.broadcast %317 : vector<16x1xf32> to vector<16x16xf32>
    %319 = arith.addf %318, %5 : vector<16x16xf32>
    %cst_65 = arith.constant dense<0xFF800000> : vector<16xf32>
    %320 = vector.multi_reduction <maximumf>, %319, %cst_65 [0] : vector<16x16xf32> to vector<16xf32>
    %321 = vector.shape_cast %320 : vector<16xf32> to vector<1x16xf32>
    %322 = vector.broadcast %321 : vector<1x16xf32> to vector<16x16xf32>
    %323 = arith.cmpf oeq, %319, %322 : vector<16x16xf32>
    %c16_i32_66 = arith.constant 16 : i32
    %324 = vector.broadcast %c16_i32_66 : i32 to vector<16x16xi32>
    %325 = arith.select %323, %251, %324 : vector<16x16xi1>, vector<16x16xi32>
    %cst_67 = arith.constant dense<2147483647> : vector<16xi32>
    %326 = vector.multi_reduction <minsi>, %325, %cst_67 [0] : vector<16x16xi32> to vector<16xi32>
    %327 = vector.shape_cast %326 : vector<16xi32> to vector<1x16xi32>
    %328 = vector.extract_strided_slice %246 {offsets = [3, 0], sizes = [1, 16], strides = [1, 1]} : vector<8x16xf32> to vector<1x16xf32>
    %329 = arith.addf %321, %328 : vector<1x16xf32>
    %330 = vector.broadcast %329 : vector<1x16xf32> to vector<16x16xf32>
    %331 = arith.addf %330, %4 : vector<16x16xf32>
    %cst_68 = arith.constant dense<0xFF800000> : vector<16xf32>
    %332 = vector.multi_reduction <maximumf>, %331, %cst_68 [1] : vector<16x16xf32> to vector<16xf32>
    %333 = vector.shape_cast %332 : vector<16xf32> to vector<16x1xf32>
    %334 = vector.broadcast %333 : vector<16x1xf32> to vector<16x16xf32>
    %335 = arith.cmpf oeq, %331, %334 : vector<16x16xf32>
    %c16_i32_69 = arith.constant 16 : i32
    %336 = vector.broadcast %c16_i32_69 : i32 to vector<16x16xi32>
    %337 = arith.select %335, %250, %336 : vector<16x16xi1>, vector<16x16xi32>
    %cst_70 = arith.constant dense<2147483647> : vector<16xi32>
    %338 = vector.multi_reduction <minsi>, %337, %cst_70 [1] : vector<16x16xi32> to vector<16xi32>
    %339 = vector.shape_cast %338 : vector<16xi32> to vector<16x1xi32>
    %340 = arith.addf %333, %273 : vector<16x1xf32>
    %341 = vector.broadcast %340 : vector<16x1xf32> to vector<16x16xf32>
    %342 = arith.addf %341, %5 : vector<16x16xf32>
    %cst_71 = arith.constant dense<0xFF800000> : vector<16xf32>
    %343 = vector.multi_reduction <maximumf>, %342, %cst_71 [0] : vector<16x16xf32> to vector<16xf32>
    %344 = vector.shape_cast %343 : vector<16xf32> to vector<1x16xf32>
    %345 = vector.broadcast %344 : vector<1x16xf32> to vector<16x16xf32>
    %346 = arith.cmpf oeq, %342, %345 : vector<16x16xf32>
    %c16_i32_72 = arith.constant 16 : i32
    %347 = vector.broadcast %c16_i32_72 : i32 to vector<16x16xi32>
    %348 = arith.select %346, %251, %347 : vector<16x16xi1>, vector<16x16xi32>
    %cst_73 = arith.constant dense<2147483647> : vector<16xi32>
    %349 = vector.multi_reduction <minsi>, %348, %cst_73 [0] : vector<16x16xi32> to vector<16xi32>
    %350 = vector.shape_cast %349 : vector<16xi32> to vector<1x16xi32>
    %351 = vector.extract_strided_slice %246 {offsets = [5, 0], sizes = [1, 16], strides = [1, 1]} : vector<8x16xf32> to vector<1x16xf32>
    %352 = arith.addf %344, %351 : vector<1x16xf32>
    %353 = vector.broadcast %352 : vector<1x16xf32> to vector<16x16xf32>
    %354 = arith.addf %353, %4 : vector<16x16xf32>
    %cst_74 = arith.constant dense<0xFF800000> : vector<16xf32>
    %355 = vector.multi_reduction <maximumf>, %354, %cst_74 [1] : vector<16x16xf32> to vector<16xf32>
    %356 = vector.shape_cast %355 : vector<16xf32> to vector<16x1xf32>
    %357 = vector.broadcast %356 : vector<16x1xf32> to vector<16x16xf32>
    %358 = arith.cmpf oeq, %354, %357 : vector<16x16xf32>
    %c16_i32_75 = arith.constant 16 : i32
    %359 = vector.broadcast %c16_i32_75 : i32 to vector<16x16xi32>
    %360 = arith.select %358, %250, %359 : vector<16x16xi1>, vector<16x16xi32>
    %cst_76 = arith.constant dense<2147483647> : vector<16xi32>
    %361 = vector.multi_reduction <minsi>, %360, %cst_76 [1] : vector<16x16xi32> to vector<16xi32>
    %362 = vector.shape_cast %361 : vector<16xi32> to vector<16x1xi32>
    %363 = arith.addf %356, %280 : vector<16x1xf32>
    %364 = vector.broadcast %363 : vector<16x1xf32> to vector<16x16xf32>
    %365 = arith.addf %364, %5 : vector<16x16xf32>
    %cst_77 = arith.constant dense<0xFF800000> : vector<16xf32>
    %366 = vector.multi_reduction <maximumf>, %365, %cst_77 [0] : vector<16x16xf32> to vector<16xf32>
    %367 = vector.shape_cast %366 : vector<16xf32> to vector<1x16xf32>
    %368 = vector.broadcast %367 : vector<1x16xf32> to vector<16x16xf32>
    %369 = arith.cmpf oeq, %365, %368 : vector<16x16xf32>
    %c16_i32_78 = arith.constant 16 : i32
    %370 = vector.broadcast %c16_i32_78 : i32 to vector<16x16xi32>
    %371 = arith.select %369, %251, %370 : vector<16x16xi1>, vector<16x16xi32>
    %cst_79 = arith.constant dense<2147483647> : vector<16xi32>
    %372 = vector.multi_reduction <minsi>, %371, %cst_79 [0] : vector<16x16xi32> to vector<16xi32>
    %373 = vector.shape_cast %372 : vector<16xi32> to vector<1x16xi32>
    %374 = vector.extract_strided_slice %246 {offsets = [7, 0], sizes = [1, 16], strides = [1, 1]} : vector<8x16xf32> to vector<1x16xf32>
    %375 = arith.addf %367, %374 : vector<1x16xf32>
    %376 = vector.extract_strided_slice %4 {offsets = [8, 0], sizes = [1, 16], strides = [1, 1]} : vector<16x16xf32> to vector<1x16xf32>
    %377 = arith.addf %375, %376 : vector<1x16xf32>
    %cst_80 = arith.constant dense<0xFF800000> : vector<1xf32>
    %378 = vector.multi_reduction <maximumf>, %377, %cst_80 [1] : vector<1x16xf32> to vector<1xf32>
    %379 = vector.shape_cast %378 : vector<1xf32> to vector<1x1xf32>
    %380 = vector.broadcast %379 : vector<1x1xf32> to vector<1x16xf32>
    %381 = arith.cmpf oeq, %377, %380 : vector<1x16xf32>
    %c16_i32_81 = arith.constant 16 : i32
    %382 = vector.broadcast %c16_i32_81 : i32 to vector<1x16xi32>
    %383 = arith.select %381, %248, %382 : vector<1x16xi1>, vector<1x16xi32>
    %cst_82 = arith.constant dense<2147483647> : vector<1xi32>
    %384 = vector.multi_reduction <minsi>, %383, %cst_82 [1] : vector<1x16xi32> to vector<1xi32>
    %385 = vector.shape_cast %384 : vector<1xi32> to vector<1x1xi32>
    %c0_83 = arith.constant 0 : index
    %c0_84 = arith.constant 0 : index
    %386 = vector.load %arg3[%c0_83, %c0_84] : memref<1x1xf32, #tpu.memory_space<vmem>>, vector<1x1xf32>
    tpu.vector_store %arg3[%c0_83, %c0_84], %379 {strides = array<i32>} : memref<1x1xf32, #tpu.memory_space<vmem>>, vector<1x1xf32>,
    %387 = vector.broadcast %385 : vector<1x1xi32> to vector<1x16xi32>
    %388 = arith.cmpi eq, %248, %387 : vector<1x16xi32>
    %389 = arith.extui %388 : vector<1x16xi1> to vector<1x16xi32>
    %390 = vector.broadcast %385 : vector<1x1xi32> to vector<1x16xi32>
    %391 = arith.cmpi eq, %248, %390 : vector<1x16xi32>
    %c0_i32 = arith.constant 0 : i32
    %392 = vector.broadcast %c0_i32 : i32 to vector<1x16xi32>
    %393 = arith.select %391, %373, %392 : vector<1x16xi1>, vector<1x16xi32>
    %cst_85 = arith.constant dense<0> : vector<1xi32>
    %394 = vector.multi_reduction <add>, %393, %cst_85 [1] : vector<1x16xi32> to vector<1xi32>
    %395 = vector.shape_cast %394 : vector<1xi32> to vector<1x1xi32>
    %396 = vector.broadcast %395 : vector<1x1xi32> to vector<1x16xi32>
    %397 = arith.cmpi eq, %248, %396 : vector<1x16xi32>
    %398 = arith.extui %397 : vector<1x16xi1> to vector<1x16xi32>
    %399 = vector.broadcast %395 : vector<1x1xi32> to vector<16x1xi32>
    %400 = arith.cmpi eq, %249, %399 : vector<16x1xi32>
    %c0_i32_86 = arith.constant 0 : i32
    %401 = vector.broadcast %c0_i32_86 : i32 to vector<16x1xi32>
    %402 = arith.select %400, %362, %401 : vector<16x1xi1>, vector<16x1xi32>
    %cst_87 = arith.constant dense<0> : vector<1xi32>
    %403 = vector.multi_reduction <add>, %402, %cst_87 [0] : vector<16x1xi32> to vector<1xi32>
    %404 = vector.shape_cast %403 : vector<1xi32> to vector<1x1xi32>
    %405 = vector.broadcast %404 : vector<1x1xi32> to vector<1x16xi32>
    %406 = arith.cmpi eq, %248, %405 : vector<1x16xi32>
    %407 = arith.extui %406 : vector<1x16xi1> to vector<1x16xi32>
    %408 = vector.broadcast %404 : vector<1x1xi32> to vector<1x16xi32>
    %409 = arith.cmpi eq, %248, %408 : vector<1x16xi32>
    %c0_i32_88 = arith.constant 0 : i32
    %410 = vector.broadcast %c0_i32_88 : i32 to vector<1x16xi32>
    %411 = arith.select %409, %350, %410 : vector<1x16xi1>, vector<1x16xi32>
    %cst_89 = arith.constant dense<0> : vector<1xi32>
    %412 = vector.multi_reduction <add>, %411, %cst_89 [1] : vector<1x16xi32> to vector<1xi32>
    %413 = vector.shape_cast %412 : vector<1xi32> to vector<1x1xi32>
    %414 = vector.broadcast %413 : vector<1x1xi32> to vector<1x16xi32>
    %415 = arith.cmpi eq, %248, %414 : vector<1x16xi32>
    %416 = arith.extui %415 : vector<1x16xi1> to vector<1x16xi32>
    %417 = vector.broadcast %413 : vector<1x1xi32> to vector<16x1xi32>
    %418 = arith.cmpi eq, %249, %417 : vector<16x1xi32>
    %c0_i32_90 = arith.constant 0 : i32
    %419 = vector.broadcast %c0_i32_90 : i32 to vector<16x1xi32>
    %420 = arith.select %418, %339, %419 : vector<16x1xi1>, vector<16x1xi32>
    %cst_91 = arith.constant dense<0> : vector<1xi32>
    %421 = vector.multi_reduction <add>, %420, %cst_91 [0] : vector<16x1xi32> to vector<1xi32>
    %422 = vector.shape_cast %421 : vector<1xi32> to vector<1x1xi32>
    %423 = vector.broadcast %422 : vector<1x1xi32> to vector<1x16xi32>
    %424 = arith.cmpi eq, %248, %423 : vector<1x16xi32>
    %425 = arith.extui %424 : vector<1x16xi1> to vector<1x16xi32>
    %426 = vector.broadcast %422 : vector<1x1xi32> to vector<1x16xi32>
    %427 = arith.cmpi eq, %248, %426 : vector<1x16xi32>
    %c0_i32_92 = arith.constant 0 : i32
    %428 = vector.broadcast %c0_i32_92 : i32 to vector<1x16xi32>
    %429 = arith.select %427, %327, %428 : vector<1x16xi1>, vector<1x16xi32>
    %cst_93 = arith.constant dense<0> : vector<1xi32>
    %430 = vector.multi_reduction <add>, %429, %cst_93 [1] : vector<1x16xi32> to vector<1xi32>
    %431 = vector.shape_cast %430 : vector<1xi32> to vector<1x1xi32>
    %432 = vector.broadcast %431 : vector<1x1xi32> to vector<1x16xi32>
    %433 = arith.cmpi eq, %248, %432 : vector<1x16xi32>
    %434 = arith.extui %433 : vector<1x16xi1> to vector<1x16xi32>
    %435 = vector.broadcast %431 : vector<1x1xi32> to vector<16x1xi32>
    %436 = arith.cmpi eq, %249, %435 : vector<16x1xi32>
    %c0_i32_94 = arith.constant 0 : i32
    %437 = vector.broadcast %c0_i32_94 : i32 to vector<16x1xi32>
    %438 = arith.select %436, %316, %437 : vector<16x1xi1>, vector<16x1xi32>
    %cst_95 = arith.constant dense<0> : vector<1xi32>
    %439 = vector.multi_reduction <add>, %438, %cst_95 [0] : vector<16x1xi32> to vector<1xi32>
    %440 = vector.shape_cast %439 : vector<1xi32> to vector<1x1xi32>
    %441 = vector.broadcast %440 : vector<1x1xi32> to vector<1x16xi32>
    %442 = arith.cmpi eq, %248, %441 : vector<1x16xi32>
    %443 = arith.extui %442 : vector<1x16xi1> to vector<1x16xi32>
    %444 = vector.broadcast %440 : vector<1x1xi32> to vector<1x16xi32>
    %445 = arith.cmpi eq, %248, %444 : vector<1x16xi32>
    %c0_i32_96 = arith.constant 0 : i32
    %446 = vector.broadcast %c0_i32_96 : i32 to vector<1x16xi32>
    %447 = arith.select %445, %304, %446 : vector<1x16xi1>, vector<1x16xi32>
    %cst_97 = arith.constant dense<0> : vector<1xi32>
    %448 = vector.multi_reduction <add>, %447, %cst_97 [1] : vector<1x16xi32> to vector<1xi32>
    %449 = vector.shape_cast %448 : vector<1xi32> to vector<1x1xi32>
    %450 = vector.broadcast %449 : vector<1x1xi32> to vector<1x16xi32>
    %451 = arith.cmpi eq, %248, %450 : vector<1x16xi32>
    %452 = arith.extui %451 : vector<1x16xi1> to vector<1x16xi32>
    %453 = tpu.concatenate %452, %443, %434, %425, %416, %407, %398, %389 in 0 : vector<1x16xi32>, vector<1x16xi32>, vector<1x16xi32>, vector<1x16xi32>, vector<1x16xi32>, vector<1x16xi32>, vector<1x16xi32>, vector<1x16xi32> -> vector<8x16xi32>
    %c0_98 = arith.constant 0 : index
    %c0_99 = arith.constant 0 : index
    %454 = vector.load %arg4[%c0_98, %c0_99] : memref<8x16xi32, #tpu.memory_space<vmem>>, vector<8x16xi32>
    tpu.vector_store %arg4[%c0_98, %c0_99], %453 {strides = array<i32>} : memref<8x16xi32, #tpu.memory_space<vmem>>, vector<8x16xi32>,
    return
  }
}

</mosaic_0001>

<llo_original>
// kernel: tpu_custom_call.1
$region0: #{tpu_custom_call.1}
  #allocation0 [shape = 'u32[]', space=smem, size = 0x4, offset = 0x4, fixed_abs, tag = 'smem constant byte address 0x4 - core index']
  #allocation1 [shape = 'u32[144,128]{1,0:T(1,128)}', space=vmem, size = 0x12000, scoped, tag = 'internal scratch']
  %s0 = inlined_call_operand.vmem [shape: f32[8,64], index: 0, kind: input, shape index: {}]
  %s1 = inlined_call_operand.hbm [shape: f32[97,128], index: 1, kind: input, shape index: {}]
  %s2 = inlined_call_operand.vmem [shape: f32[72,16], index: 2, kind: input, shape index: {}]
  %s3 = inlined_call_operand.hbm [shape: f32[1,1], index: 3, kind: output, shape index: {0}]
  %s4 = inlined_call_operand.hbm [shape: s32[8,16], index: 4, kind: output, shape index: {1}]
  %s5 = inlined_call_operand.hbm [shape: f32[8,16], index: 5, kind: output, shape index: {2}]
  %6 = xla_tuple %s3, %s4, %s5
  %s7 = sld [smem:[#allocation0]]
  $region42: #{tpu_custom_call.1} parent=0
    _
  %s9 = ssub.s32 1, %s7
  %s10 = scalar_select 0, %s9, %s7
  $region1: #{tpu_custom_call.1} parent=0
    #allocation2 [shape = 'u8[53248]{0}', space=vmem, size = 0xd000, scoped, tag = 'input window, operand 1, single buffered']
    #allocation3 [shape = 's32[1]{0}', space=sflag, size = 0x4, scoped, tag = 'scoped memory for tpu_custom_call.1']
    #allocation4 [shape = 's32[1]{0}', space=sflag, size = 0x4, scoped, tag = 'scoped memory for tpu_custom_call.1']
    #allocation5 [shape = 'u8[512]{0}', space=vmem, size = 0x400, scoped, tag = 'output window, operand 0, single buffered']
    #allocation6 [shape = 'u8[4096]{0}', space=vmem, size = 0x1000, scoped, tag = 'output window, operand 1, single buffered']
    #allocation7 [shape = 's32[1]{0}', space=sflag, size = 0x4, scoped, tag = 'scoped memory for tpu_custom_call.1']
    #allocation8 [shape = 'u8[4096]{0}', space=vmem, size = 0x1000, scoped, tag = 'output window, operand 2, single buffered']
    %11 = vsyncpa [#allocation3], 0
    %12 = vsyncpa [#allocation4], 0
    %13 = vsyncpa [#allocation7], 0
    // Predicated region
    $region2: #{tpu_custom_call.1} parent=1 // pred_check
      _
    $region3: #{tpu_custom_call.1} parent=1 // pred_check_branch
      %15 = sbr.rel (0) target = $region5
    $region4: #{tpu_custom_call.1} parent=1 // pred_region
      _
    $region5: #{tpu_custom_call.1} parent=1 // pred_fallthru
      _
    // Predicated region
    $region6: #{tpu_custom_call.1} parent=1 // pred_check
      _
    $region7: #{tpu_custom_call.1} parent=1 // pred_check_branch
      %17 = sbr.rel (0) target = $region9
    $region8: #{tpu_custom_call.1} parent=1 // pred_region
      %s19 = ssub.s32 1664, 1664
      %20 = vsyncadd [#allocation3], %s19
      %s21 = sshll.u32 [#allocation2], 4
      %s22 = int_to_ptr.vmem [resolvable:$true] %s21
      %27 = dma.hbm_to_vmem [thread:$0]  %s1, 1664, %s22, [#allocation3], 128, 128, 8
    $region9: #{tpu_custom_call.1} parent=1 // pred_fallthru
      _
    // Predicated region
    $region10: #{tpu_custom_call.1} parent=1 // pred_check
      _
    $region11: #{tpu_custom_call.1} parent=1 // pred_check_branch
      %29 = sbr.rel (0) target = $region13
    $region12: #{tpu_custom_call.1} parent=1 // pred_region
      _
    $region13: #{tpu_custom_call.1} parent=1 // pred_fallthru
      _
    // Predicated region
    $region14: #{tpu_custom_call.1} parent=1 // pred_check
      _
    $region15: #{tpu_custom_call.1} parent=1 // pred_check_branch
      %31 = sbr.rel (0) target = $region17
    $region16: #{tpu_custom_call.1} parent=1 // pred_region
      %32 = dma.done [#allocation3], 1664
    $region17: #{tpu_custom_call.1} parent=1 // pred_fallthru
      _
    %v33 = vld [vmem:[#allocation2] sm:$0xff]
    %v34 = vld [vmem:[#allocation2 + $0x8] sm:$0xff]
    %v35 = vld [vmem:[#allocation2 + $0x10] sm:$0xff]
    %v36 = vld [vmem:[#allocation2 + $0x18] sm:$0xff]
    %v37 = vld [vmem:[#allocation2 + $0x20] sm:$0xff]
    %v38 = vld [vmem:[#allocation2 + $0x28] sm:$0xff]
    %v39 = vld [vmem:[#allocation2 + $0x30] sm:$0xff]
    %v40 = vld [vmem:[#allocation2 + $0x38] sm:$0xff]
    %v41 = vld [vmem:[#allocation2 + $0x40] sm:$0xff]
    %v42 = vld [vmem:[#allocation2 + $0x48] sm:$0xff]
    %v43 = vld [vmem:[#allocation2 + $0x50] sm:$0xff]
    %v44 = vld [vmem:[#allocation2 + $0x58] sm:$0xff]
    %v45 = vld [vmem:[#allocation2 + $0x60] sm:$0x1]
    %v46 = vld [vmem:[%s2] sm:$0xff]
    %v47 = vld [vmem:[%s2 + $0x8] sm:$0xff]
    %v48 = vld [vmem:[%s2 + $0x10] sm:$0xff]
    %v49 = vld [vmem:[%s2 + $0x18] sm:$0xff]
    %v50 = vld [vmem:[%s2 + $0x20] sm:$0xff]
    %v51 = vld [vmem:[%s2 + $0x28] sm:$0xff]
    %v52 = vld [vmem:[%s2 + $0x30] sm:$0xff]
    %v53 = vld [vmem:[%s2 + $0x38] sm:$0xff]
    %v54 = vld [vmem:[%s2 + $0x40] sm:$0xff]
    %v55 = vld [vmem:[%s0] sm:$0xff]
    %v56 = vlaneseq
    %v57 = vshrl.u32 %v56, 7
    %v58 = vsub.s32 0, %v57
    %v59 = vrot.slane %v45, %v58
    %vm60 = vcmask 523264
    %v62 = vsel %vm60, %v55, 0
    %64 = vmatprep.subr.mxu0 0.0
    %65 = vmatpush1.msra.mxu0 0.0
    %66 = vmatprep.subr.mxu0 0.0
    %67 = vmatpush1.msra.mxu0 0.0
    %68 = vmatprep.subr.mxu0 0.0
    %69 = vmatpush1.msra.mxu0 0.0
    %70 = vmatprep.subr.mxu0 0.0
    %71 = vmatpush1.msra.mxu0 0.0
    %72 = vmatprep.subr.mxu0 0.0
    %73 = vmatpush1.msra.mxu0 0.0
    %74 = vmatprep.subr.mxu0 0.0
    %75 = vmatpush1.msra.mxu0 0.0
    %76 = vmatprep.subr.mxu0 0.0
    %77 = vmatpush1.msra.mxu0 0.0
    %78 = vmatprep.subr.mxu0 0.0
    %79 = vmatpush1.msra.mxu0 0.0
    %80 = vmatprep.subr.mxu0 0.0
    %81 = vmatpush1.msra.mxu0 %v40
    %82 = vmatprep.subr.mxu0 0.0
    %83 = vmatpush1.msra.mxu0 %v39
    %84 = vmatprep.subr.mxu0 0.0
    %85 = vmatpush1.msra.mxu0 %v38
    %86 = vmatprep.subr.mxu0 0.0
    %87 = vmatpush1.msra.mxu0 %v37
    %88 = vmatprep.subr.mxu0 0.0
    %89 = vmatpush1.msra.mxu0 %v36
    %90 = vmatprep.subr.mxu0 0.0
    %91 = vmatpush1.msra.mxu0 %v35
    %92 = vmatprep.subr.mxu0 0.0
    %93 = vmatpush1.msra.mxu0 %v34
    %94 = vmatprep.subr.mxu0 0.0
    %95 = vmatpush1.msra.mxu0 %v33
    %96 = vmatprep.subr.mxu0 0.0
    %97 = vmatpush2.msra.mxu0 0.0
    %98 = vmatprep.subr.mxu0 0.0
    %99 = vmatpush2.msra.mxu0 0.0
    %100 = vmatprep.subr.mxu0 0.0
    %101 = vmatpush2.msra.mxu0 0.0
    %102 = vmatprep.subr.mxu0 0.0
    %103 = vmatpush2.msra.mxu0 0.0
    %104 = vmatprep.subr.mxu0 0.0
    %105 = vmatpush2.msra.mxu0 0.0
    %106 = vmatprep.subr.mxu0 0.0
    %107 = vmatpush2.msra.mxu0 0.0
    %108 = vmatprep.subr.mxu0 0.0
    %109 = vmatpush2.msra.mxu0 0.0
    %110 = vmatprep.subr.mxu0 0.0
    %111 = vmatpush2.msra.mxu0 0.0
    %112 = vmatprep.subr.mxu0 0.0
    %113 = vmatpush2.msra.mxu0 0.0
    %114 = vmatprep.subr.mxu0 0.0
    %115 = vmatpush2.msra.mxu0 0.0
    %116 = vmatprep.subr.mxu0 0.0
    %117 = vmatpush2.msra.mxu0 0.0
    %118 = vmatprep.subr.mxu0 0.0
    %119 = vmatpush2.msra.mxu0 0.0
    %120 = vmatprep.subr.mxu0 0.0
    %121 = vmatpush2.msra.mxu0 0.0
    %122 = vmatprep.subr.mxu0 0.0
    %123 = vmatpush2.msra.mxu0 0.0
    %124 = vmatprep.subr.mxu0 0.0
    %125 = vmatpush2.msra.mxu0 0.0
    %126 = vmatprep.subr.mxu0 0.0
    %127 = vmatpush2.msra.mxu0 0.0
    %128 = vmatprep.mubr.f32.mxu0 0.0
    %129 = vmatmul.mubr.f32.gmra.mxu0 %v62
    %v130 = vpop.f32.mrf.mxu0
    %v131 = vadd.f32 %v59, %v130
    %v132 = vpop.f32.mrf.mxu0
    %133 = vdwg.mxu0
    %vm134 = vcmask 261120
    %v136 = vsel %vm134, 0.0, 0
    %138 = vmatprep.subr.mxu0 0.0
    %139 = vmatpush1.msra.mxu0 0.0
    %140 = vmatprep.subr.mxu0 0.0
    %141 = vmatpush1.msra.mxu0 0.0
    %142 = vmatprep.subr.mxu0 0.0
    %143 = vmatpush1.msra.mxu0 0.0
    %144 = vmatprep.subr.mxu0 0.0
    %145 = vmatpush1.msra.mxu0 0.0
    %146 = vmatprep.subr.mxu0 0.0
    %147 = vmatpush1.msra.mxu0 0.0
    %148 = vmatprep.subr.mxu0 0.0
    %149 = vmatpush1.msra.mxu0 0.0
    %150 = vmatprep.subr.mxu0 0.0
    %151 = vmatpush1.msra.mxu0 0.0
    %152 = vmatprep.subr.mxu0 0.0
    %153 = vmatpush1.msra.mxu0 0.0
    %154 = vmatprep.subr.mxu0 0.0
    %155 = vmatpush1.msra.mxu0 0.0
    %156 = vmatprep.subr.mxu0 0.0
    %157 = vmatpush1.msra.mxu0 0.0
    %158 = vmatprep.subr.mxu0 0.0
    %159 = vmatpush1.msra.mxu0 0.0
    %160 = vmatprep.subr.mxu0 0.0
    %161 = vmatpush1.msra.mxu0 0.0
    %162 = vmatprep.subr.mxu0 0.0
    %163 = vmatpush1.msra.mxu0 %v44
    %164 = vmatprep.subr.mxu0 0.0
    %165 = vmatpush1.msra.mxu0 %v43
    %166 = vmatprep.subr.mxu0 0.0
    %167 = vmatpush1.msra.mxu0 %v42
    %168 = vmatprep.subr.mxu0 0.0
    %169 = vmatpush1.msra.mxu0 %v41
    %170 = vmatprep.subr.mxu0 0.0
    %171 = vmatpush2.msra.mxu0 0.0
    %172 = vmatprep.subr.mxu0 0.0
    %173 = vmatpush2.msra.mxu0 0.0
    %174 = vmatprep.subr.mxu0 0.0
    %175 = vmatpush2.msra.mxu0 0.0
    %176 = vmatprep.subr.mxu0 0.0
    %177 = vmatpush2.msra.mxu0 0.0
    %178 = vmatprep.subr.mxu0 0.0
    %179 = vmatpush2.msra.mxu0 0.0
    %180 = vmatprep.subr.mxu0 0.0
    %181 = vmatpush2.msra.mxu0 0.0
    %182 = vmatprep.subr.mxu0 0.0
    %183 = vmatpush2.msra.mxu0 0.0
    %184 = vmatprep.subr.mxu0 0.0
    %185 = vmatpush2.msra.mxu0 0.0
    %186 = vmatprep.subr.mxu0 0.0
    %187 = vmatpush2.msra.mxu0 0.0
    %188 = vmatprep.subr.mxu0 0.0
    %189 = vmatpush2.msra.mxu0 0.0
    %190 = vmatprep.subr.mxu0 0.0
    %191 = vmatpush2.msra.mxu0 0.0
    %192 = vmatprep.subr.mxu0 0.0
    %193 = vmatpush2.msra.mxu0 0.0
    %194 = vmatprep.subr.mxu0 0.0
    %195 = vmatpush2.msra.mxu0 0.0
    %196 = vmatprep.subr.mxu0 0.0
    %197 = vmatpush2.msra.mxu0 0.0
    %198 = vmatprep.subr.mxu0 0.0
    %199 = vmatpush2.msra.mxu0 0.0
    %200 = vmatprep.subr.mxu0 0.0
    %201 = vmatpush2.msra.mxu0 0.0
    %202 = vmatprep.mubr.f32.mxu0 0.0
    %203 = vmatmul.mubr.f32.gmra.mxu0 %v136
    %v204 = vpop.f32.mrf.mxu0
    %v205 = vadd.f32 0.0, %v204
    %v206 = vpop.f32.mrf.mxu0
    %207 = vdwg.mxu0
    %v208 = vadd.f32 %v131, %v205
    %v209 = vxor.u32 %v208, 2147483648
    %v210 = vmul.f32 %v209, 1.442695
    %v211 = vpow.pop %v210
    %v212 = vadd.f32 %v211, 1.0
    %v213 = vrcp.pop %v212
    %v214 = vmul.f32 1.0, %v213
    %v215 = vtanh.pop %v208
    %v216 = vmul.f32 %v214, 0.0
    %218 = vrot.lane.b32.xlu0 %v215, 64
    %v219 = vpop.permute.xlu0 %218
    %v221 = vmul.f32 %v214, %v219
    %223 = vrot.lane.b32.xlu0 %v221, 32
    %v224 = vpop.permute.xlu0 %223
    %v226 = vadd.f32 %v216, %v224
    %v227 = vtanh.pop %v226
    %229 = vrot.lane.b32.xlu0 %v227, 64
    %v230 = vpop.permute.xlu0 %229
    %v232 = vmul.f32 %v214, %v230
    %234 = vrot.lane.b32.xlu0 %v232, 32
    %v235 = vpop.permute.xlu0 %234
    %v236 = vsel %vm134, %v235, 0
    %238 = vmatprep.subr.mxu0 0.0
    %239 = vmatpush1.msra.mxu0 0.0
    %240 = vmatprep.subr.mxu0 0.0
    %241 = vmatpush1.msra.mxu0 0.0
    %242 = vmatprep.subr.mxu0 0.0
    %243 = vmatpush1.msra.mxu0 0.0
    %244 = vmatprep.subr.mxu0 0.0
    %245 = vmatpush1.msra.mxu0 0.0
    %246 = vmatprep.subr.mxu0 0.0
    %247 = vmatpush1.msra.mxu0 0.0
    %248 = vmatprep.subr.mxu0 0.0
    %249 = vmatpush1.msra.mxu0 0.0
    %250 = vmatprep.subr.mxu0 0.0
    %251 = vmatpush1.msra.mxu0 0.0
    %252 = vmatprep.subr.mxu0 0.0
    %253 = vmatpush1.msra.mxu0 0.0
    %254 = vmatprep.subr.mxu0 0.0
    %255 = vmatpush1.msra.mxu0 0.0
    %256 = vmatprep.subr.mxu0 0.0
    %257 = vmatpush1.msra.mxu0 0.0
    %258 = vmatprep.subr.mxu0 0.0
    %259 = vmatpush1.msra.mxu0 0.0
    %260 = vmatprep.subr.mxu0 0.0
    %261 = vmatpush1.msra.mxu0 0.0
    %262 = vmatprep.subr.mxu0 0.0
    %263 = vmatpush1.msra.mxu0 %v44
    %264 = vmatprep.subr.mxu0 0.0
    %265 = vmatpush1.msra.mxu0 %v43
    %266 = vmatprep.subr.mxu0 0.0
    %267 = vmatpush1.msra.mxu0 %v42
    %268 = vmatprep.subr.mxu0 0.0
    %269 = vmatpush1.msra.mxu0 %v41
    %270 = vmatprep.subr.mxu0 0.0
    %271 = vmatpush2.msra.mxu0 0.0
    %272 = vmatprep.subr.mxu0 0.0
    %273 = vmatpush2.msra.mxu0 0.0
    %274 = vmatprep.subr.mxu0 0.0
    %275 = vmatpush2.msra.mxu0 0.0
    %276 = vmatprep.subr.mxu0 0.0
    %277 = vmatpush2.msra.mxu0 0.0
    %278 = vmatprep.subr.mxu0 0.0
    %279 = vmatpush2.msra.mxu0 0.0
    %280 = vmatprep.subr.mxu0 0.0
    %281 = vmatpush2.msra.mxu0 0.0
    %282 = vmatprep.subr.mxu0 0.0
    %283 = vmatpush2.msra.mxu0 0.0
    %284 = vmatprep.subr.mxu0 0.0
    %285 = vmatpush2.msra.mxu0 0.0
    %286 = vmatprep.subr.mxu0 0.0
    %287 = vmatpush2.msra.mxu0 0.0
    %288 = vmatprep.subr.mxu0 0.0
    %289 = vmatpush2.msra.mxu0 0.0
    %290 = vmatprep.subr.mxu0 0.0
    %291 = vmatpush2.msra.mxu0 0.0
    %292 = vmatprep.subr.mxu0 0.0
    %293 = vmatpush2.msra.mxu0 0.0
    %294 = vmatprep.subr.mxu0 0.0
    %295 = vmatpush2.msra.mxu0 0.0
    %296 = vmatprep.subr.mxu0 0.0
    %297 = vmatpush2.msra.mxu0 0.0
    %298 = vmatprep.subr.mxu0 0.0
    %299 = vmatpush2.msra.mxu0 0.0
    %300 = vmatprep.subr.mxu0 0.0
    %301 = vmatpush2.msra.mxu0 0.0
    %302 = vmatprep.mubr.f32.mxu0 0.0
    %303 = vmatmul.mubr.f32.gmra.mxu0 %v236
    %v304 = vpop.f32.mrf.mxu0
    %v305 = vadd.f32 0.0, %v304
    %v306 = vpop.f32.mrf.mxu0
    %307 = vdwg.mxu0
    %v309 = vrot.slane %v305, 7
    %v311 = vadd.f32 %v131, %v309
    %v312 = vxor.u32 %v311, 2147483648
    %v313 = vmul.f32 %v312, 1.442695
    %v314 = vpow.pop %v313
    %v315 = vadd.f32 %v314, 1.0
    %v316 = vrcp.pop %v315
    %v317 = vmul.f32 1.0, %v316
    %v318 = vtanh.pop %v311
    %v320 = vrot.slane %v226, 7
    %v322 = vmul.f32 %v317, %v320
    %324 = vrot.lane.b32.xlu0 %v318, 64
    %v325 = vpop.permute.xlu0 %324
    %v327 = vmul.f32 %v317, %v325
    %329 = vrot.lane.b32.xlu0 %v327, 32
    %v330 = vpop.permute.xlu0 %329
    %v332 = vadd.f32 %v322, %v330
    %v333 = vtanh.pop %v332
    %335 = vrot.lane.b32.xlu0 %v333, 64
    %v336 = vpop.permute.xlu0 %335
    %v338 = vmul.f32 %v317, %v336
    %v340 = vrot.slane %v338, 1
    %341 = vrot.lane.b32.xlu0 %v340, 32
    %v342 = vpop.permute.xlu0 %341
    %v343 = vsel %vm134, %v342, 0
    %345 = vmatprep.subr.mxu0 0.0
    %346 = vmatpush1.msra.mxu0 0.0
    %347 = vmatprep.subr.mxu0 0.0
    %348 = vmatpush1.msra.mxu0 0.0
    %349 = vmatprep.subr.mxu0 0.0
    %350 = vmatpush1.msra.mxu0 0.0
    %351 = vmatprep.subr.mxu0 0.0
    %352 = vmatpush1.msra.mxu0 0.0
    %353 = vmatprep.subr.mxu0 0.0
    %354 = vmatpush1.msra.mxu0 0.0
    %355 = vmatprep.subr.mxu0 0.0
    %356 = vmatpush1.msra.mxu0 0.0
    %357 = vmatprep.subr.mxu0 0.0
    %358 = vmatpush1.msra.mxu0 0.0
    %359 = vmatprep.subr.mxu0 0.0
    %360 = vmatpush1.msra.mxu0 0.0
    %361 = vmatprep.subr.mxu0 0.0
    %362 = vmatpush1.msra.mxu0 0.0
    %363 = vmatprep.subr.mxu0 0.0
    %364 = vmatpush1.msra.mxu0 0.0
    %365 = vmatprep.subr.mxu0 0.0
    %366 = vmatpush1.msra.mxu0 0.0
    %367 = vmatprep.subr.mxu0 0.0
    %368 = vmatpush1.msra.mxu0 0.0
    %369 = vmatprep.subr.mxu0 0.0
    %370 = vmatpush1.msra.mxu0 %v44
    %371 = vmatprep.subr.mxu0 0.0
    %372 = vmatpush1.msra.mxu0 %v43
    %373 = vmatprep.subr.mxu0 0.0
    %374 = vmatpush1.msra.mxu0 %v42
    %375 = vmatprep.subr.mxu0 0.0
    %376 = vmatpush1.msra.mxu0 %v41
    %377 = vmatprep.subr.mxu0 0.0
    %378 = vmatpush2.msra.mxu0 0.0
    %379 = vmatprep.subr.mxu0 0.0
    %380 = vmatpush2.msra.mxu0 0.0
    %381 = vmatprep.subr.mxu0 0.0
    %382 = vmatpush2.msra.mxu0 0.0
    %383 = vmatprep.subr.mxu0 0.0
    %384 = vmatpush2.msra.mxu0 0.0
    %385 = vmatprep.subr.mxu0 0.0
    %386 = vmatpush2.msra.mxu0 0.0
    %387 = vmatprep.subr.mxu0 0.0
    %388 = vmatpush2.msra.mxu0 0.0
    %389 = vmatprep.subr.mxu0 0.0
    %390 = vmatpush2.msra.mxu0 0.0
    %391 = vmatprep.subr.mxu0 0.0
    %392 = vmatpush2.msra.mxu0 0.0
    %393 = vmatprep.subr.mxu0 0.0
    %394 = vmatpush2.msra.mxu0 0.0
    %395 = vmatprep.subr.mxu0 0.0
    %396 = vmatpush2.msra.mxu0 0.0
    %397 = vmatprep.subr.mxu0 0.0
    %398 = vmatpush2.msra.mxu0 0.0
    %399 = vmatprep.subr.mxu0 0.0
    %400 = vmatpush2.msra.mxu0 0.0
    %401 = vmatprep.subr.mxu0 0.0
    %402 = vmatpush2.msra.mxu0 0.0
    %403 = vmatprep.subr.mxu0 0.0
    %404 = vmatpush2.msra.mxu0 0.0
    %405 = vmatprep.subr.mxu0 0.0
    %406 = vmatpush2.msra.mxu0 0.0
    %407 = vmatprep.subr.mxu0 0.0
    %408 = vmatpush2.msra.mxu0 0.0
    %409 = vmatprep.mubr.f32.mxu0 0.0
    %410 = vmatmul.mubr.f32.gmra.mxu0 %v343
    %v411 = vpop.f32.mrf.mxu0
    %v412 = vadd.f32 0.0, %v411
    %v413 = vpop.f32.mrf.mxu0
    %414 = vdwg.mxu0
    %v416 = vrot.slane %v412, 6
    %v418 = vadd.f32 %v131, %v416
    %v419 = vxor.u32 %v418, 2147483648
    %v420 = vmul.f32 %v419, 1.442695
    %v421 = vpow.pop %v420
    %v422 = vadd.f32 %v421, 1.0
    %v423 = vrcp.pop %v422
    %v424 = vmul.f32 1.0, %v423
    %v425 = vtanh.pop %v418
    %v427 = vrot.slane %v332, 7
    %v429 = vmul.f32 %v424, %v427
    %431 = vrot.lane.b32.xlu0 %v425, 64
    %v432 = vpop.permute.xlu0 %431
    %v434 = vmul.f32 %v424, %v432
    %436 = vrot.lane.b32.xlu0 %v434, 32
    %v437 = vpop.permute.xlu0 %436
    %v439 = vadd.f32 %v429, %v437
    %v440 = vtanh.pop %v439
    %442 = vrot.lane.b32.xlu0 %v440, 64
    %v443 = vpop.permute.xlu0 %442
    %v445 = vmul.f32 %v424, %v443
    %v447 = vrot.slane %v445, 2
    %448 = vrot.lane.b32.xlu0 %v447, 32
    %v449 = vpop.permute.xlu0 %448
    %v450 = vsel %vm134, %v449, 0
    %452 = vmatprep.subr.mxu0 0.0
    %453 = vmatpush1.msra.mxu0 0.0
    %454 = vmatprep.subr.mxu0 0.0
    %455 = vmatpush1.msra.mxu0 0.0
    %456 = vmatprep.subr.mxu0 0.0
    %457 = vmatpush1.msra.mxu0 0.0
    %458 = vmatprep.subr.mxu0 0.0
    %459 = vmatpush1.msra.mxu0 0.0
    %460 = vmatprep.subr.mxu0 0.0
    %461 = vmatpush1.msra.mxu0 0.0
    %462 = vmatprep.subr.mxu0 0.0
    %463 = vmatpush1.msra.mxu0 0.0
    %464 = vmatprep.subr.mxu0 0.0
    %465 = vmatpush1.msra.mxu0 0.0
    %466 = vmatprep.subr.mxu0 0.0
    %467 = vmatpush1.msra.mxu0 0.0
    %468 = vmatprep.subr.mxu0 0.0
    %469 = vmatpush1.msra.mxu0 0.0
    %470 = vmatprep.subr.mxu0 0.0
    %471 = vmatpush1.msra.mxu0 0.0
    %472 = vmatprep.subr.mxu0 0.0
    %473 = vmatpush1.msra.mxu0 0.0
    %474 = vmatprep.subr.mxu0 0.0
    %475 = vmatpush1.msra.mxu0 0.0
    %476 = vmatprep.subr.mxu0 0.0
    %477 = vmatpush1.msra.mxu0 %v44
    %478 = vmatprep.subr.mxu0 0.0
    %479 = vmatpush1.msra.mxu0 %v43
    %480 = vmatprep.subr.mxu0 0.0
    %481 = vmatpush1.msra.mxu0 %v42
    %482 = vmatprep.subr.mxu0 0.0
    %483 = vmatpush1.msra.mxu0 %v41
    %484 = vmatprep.subr.mxu0 0.0
    %485 = vmatpush2.msra.mxu0 0.0
    %486 = vmatprep.subr.mxu0 0.0
    %487 = vmatpush2.msra.mxu0 0.0
    %488 = vmatprep.subr.mxu0 0.0
    %489 = vmatpush2.msra.mxu0 0.0
    %490 = vmatprep.subr.mxu0 0.0
    %491 = vmatpush2.msra.mxu0 0.0
    %492 = vmatprep.subr.mxu0 0.0
    %493 = vmatpush2.msra.mxu0 0.0
    %494 = vmatprep.subr.mxu0 0.0
    %495 = vmatpush2.msra.mxu0 0.0
    %496 = vmatprep.subr.mxu0 0.0
    %497 = vmatpush2.msra.mxu0 0.0
    %498 = vmatprep.subr.mxu0 0.0
    %499 = vmatpush2.msra.mxu0 0.0
    %500 = vmatprep.subr.mxu0 0.0
    %501 = vmatpush2.msra.mxu0 0.0
    %502 = vmatprep.subr.mxu0 0.0
    %503 = vmatpush2.msra.mxu0 0.0
    %504 = vmatprep.subr.mxu0 0.0
    %505 = vmatpush2.msra.mxu0 0.0
    %506 = vmatprep.subr.mxu0 0.0
    %507 = vmatpush2.msra.mxu0 0.0
    %508 = vmatprep.subr.mxu0 0.0
    %509 = vmatpush2.msra.mxu0 0.0
    %510 = vmatprep.subr.mxu0 0.0
    %511 = vmatpush2.msra.mxu0 0.0
    %512 = vmatprep.subr.mxu0 0.0
    %513 = vmatpush2.msra.mxu0 0.0
    %514 = vmatprep.subr.mxu0 0.0
    %515 = vmatpush2.msra.mxu0 0.0
    %516 = vmatprep.mubr.f32.mxu0 0.0
    %517 = vmatmul.mubr.f32.gmra.mxu0 %v450
    %v518 = vpop.f32.mrf.mxu0
    %v519 = vadd.f32 0.0, %v518
    %v520 = vpop.f32.mrf.mxu0
    %521 = vdwg.mxu0
    %v523 = vrot.slane %v519, 5
    %v525 = vadd.f32 %v131, %v523
    %v526 = vxor.u32 %v525, 2147483648
    %v527 = vmul.f32 %v526, 1.442695
    %v528 = vpow.pop %v527
    %v529 = vadd.f32 %v528, 1.0
    %v530 = vrcp.pop %v529
    %v531 = vmul.f32 1.0, %v530
    %v532 = vtanh.pop %v525
    %v534 = vrot.slane %v439, 7
    %v536 = vmul.f32 %v531, %v534
    %538 = vrot.lane.b32.xlu0 %v532, 64
    %v539 = vpop.permute.xlu0 %538
    %v541 = vmul.f32 %v531, %v539
    %543 = vrot.lane.b32.xlu0 %v541, 32
    %v544 = vpop.permute.xlu0 %543
    %v546 = vadd.f32 %v536, %v544
    %v547 = vtanh.pop %v546
    %549 = vrot.lane.b32.xlu0 %v547, 64
    %v550 = vpop.permute.xlu0 %549
    %v552 = vmul.f32 %v531, %v550
    %v554 = vrot.slane %v552, 3
    %555 = vrot.lane.b32.xlu0 %v554, 32
    %v556 = vpop.permute.xlu0 %555
    %v557 = vsel %vm134, %v556, 0
    %559 = vmatprep.subr.mxu0 0.0
    %560 = vmatpush1.msra.mxu0 0.0
    %561 = vmatprep.subr.mxu0 0.0
    %562 = vmatpush1.msra.mxu0 0.0
    %563 = vmatprep.subr.mxu0 0.0
    %564 = vmatpush1.msra.mxu0 0.0
    %565 = vmatprep.subr.mxu0 0.0
    %566 = vmatpush1.msra.mxu0 0.0
    %567 = vmatprep.subr.mxu0 0.0
    %568 = vmatpush1.msra.mxu0 0.0
    %569 = vmatprep.subr.mxu0 0.0
    %570 = vmatpush1.msra.mxu0 0.0
    %571 = vmatprep.subr.mxu0 0.0
    %572 = vmatpush1.msra.mxu0 0.0
    %573 = vmatprep.subr.mxu0 0.0
    %574 = vmatpush1.msra.mxu0 0.0
    %575 = vmatprep.subr.mxu0 0.0
    %576 = vmatpush1.msra.mxu0 0.0
    %577 = vmatprep.subr.mxu0 0.0
    %578 = vmatpush1.msra.mxu0 0.0
    %579 = vmatprep.subr.mxu0 0.0
    %580 = vmatpush1.msra.mxu0 0.0
    %581 = vmatprep.subr.mxu0 0.0
    %582 = vmatpush1.msra.mxu0 0.0
    %583 = vmatprep.subr.mxu0 0.0
    %584 = vmatpush1.msra.mxu0 %v44
    %585 = vmatprep.subr.mxu0 0.0
    %586 = vmatpush1.msra.mxu0 %v43
    %587 = vmatprep.subr.mxu0 0.0
    %588 = vmatpush1.msra.mxu0 %v42
    %589 = vmatprep.subr.mxu0 0.0
    %590 = vmatpush1.msra.mxu0 %v41
    %591 = vmatprep.subr.mxu0 0.0
    %592 = vmatpush2.msra.mxu0 0.0
    %593 = vmatprep.subr.mxu0 0.0
    %594 = vmatpush2.msra.mxu0 0.0
    %595 = vmatprep.subr.mxu0 0.0
    %596 = vmatpush2.msra.mxu0 0.0
    %597 = vmatprep.subr.mxu0 0.0
    %598 = vmatpush2.msra.mxu0 0.0
    %599 = vmatprep.subr.mxu0 0.0
    %600 = vmatpush2.msra.mxu0 0.0
    %601 = vmatprep.subr.mxu0 0.0
    %602 = vmatpush2.msra.mxu0 0.0
    %603 = vmatprep.subr.mxu0 0.0
    %604 = vmatpush2.msra.mxu0 0.0
    %605 = vmatprep.subr.mxu0 0.0
    %606 = vmatpush2.msra.mxu0 0.0
    %607 = vmatprep.subr.mxu0 0.0
    %608 = vmatpush2.msra.mxu0 0.0
    %609 = vmatprep.subr.mxu0 0.0
    %610 = vmatpush2.msra.mxu0 0.0
    %611 = vmatprep.subr.mxu0 0.0
    %612 = vmatpush2.msra.mxu0 0.0
    %613 = vmatprep.subr.mxu0 0.0
    %614 = vmatpush2.msra.mxu0 0.0
    %615 = vmatprep.subr.mxu0 0.0
    %616 = vmatpush2.msra.mxu0 0.0
    %617 = vmatprep.subr.mxu0 0.0
    %618 = vmatpush2.msra.mxu0 0.0
    %619 = vmatprep.subr.mxu0 0.0
    %620 = vmatpush2.msra.mxu0 0.0
    %621 = vmatprep.subr.mxu0 0.0
    %622 = vmatpush2.msra.mxu0 0.0
    %623 = vmatprep.mubr.f32.mxu0 0.0
    %624 = vmatmul.mubr.f32.gmra.mxu0 %v557
    %v625 = vpop.f32.mrf.mxu0
    %v626 = vadd.f32 0.0, %v625
    %v627 = vpop.f32.mrf.mxu0
    %628 = vdwg.mxu0
    %v630 = vrot.slane %v626, 4
    %v632 = vadd.f32 %v131, %v630
    %v633 = vxor.u32 %v632, 2147483648
    %v634 = vmul.f32 %v633, 1.442695
    %v635 = vpow.pop %v634
    %v636 = vadd.f32 %v635, 1.0
    %v637 = vrcp.pop %v636
    %v638 = vmul.f32 1.0, %v637
    %v639 = vtanh.pop %v632
    %v641 = vrot.slane %v546, 7
    %v643 = vmul.f32 %v638, %v641
    %645 = vrot.lane.b32.xlu0 %v639, 64
    %v646 = vpop.permute.xlu0 %645
    %v648 = vmul.f32 %v638, %v646
    %650 = vrot.lane.b32.xlu0 %v648, 32
    %v651 = vpop.permute.xlu0 %650
    %v653 = vadd.f32 %v643, %v651
    %v654 = vtanh.pop %v653
    %656 = vrot.lane.b32.xlu0 %v654, 64
    %v657 = vpop.permute.xlu0 %656
    %v659 = vmul.f32 %v638, %v657
    %v661 = vrot.slane %v659, 4
    %662 = vrot.lane.b32.xlu0 %v661, 32
    %v663 = vpop.permute.xlu0 %662
    %v664 = vsel %vm134, %v663, 0
    %666 = vmatprep.subr.mxu0 0.0
    %667 = vmatpush1.msra.mxu0 0.0
    %668 = vmatprep.subr.mxu0 0.0
    %669 = vmatpush1.msra.mxu0 0.0
    %670 = vmatprep.subr.mxu0 0.0
    %671 = vmatpush1.msra.mxu0 0.0
    %672 = vmatprep.subr.mxu0 0.0
    %673 = vmatpush1.msra.mxu0 0.0
    %674 = vmatprep.subr.mxu0 0.0
    %675 = vmatpush1.msra.mxu0 0.0
    %676 = vmatprep.subr.mxu0 0.0
    %677 = vmatpush1.msra.mxu0 0.0
    %678 = vmatprep.subr.mxu0 0.0
    %679 = vmatpush1.msra.mxu0 0.0
    %680 = vmatprep.subr.mxu0 0.0
    %681 = vmatpush1.msra.mxu0 0.0
    %682 = vmatprep.subr.mxu0 0.0
    %683 = vmatpush1.msra.mxu0 0.0
    %684 = vmatprep.subr.mxu0 0.0
    %685 = vmatpush1.msra.mxu0 0.0
    %686 = vmatprep.subr.mxu0 0.0
    %687 = vmatpush1.msra.mxu0 0.0
    %688 = vmatprep.subr.mxu0 0.0
    %689 = vmatpush1.msra.mxu0 0.0
    %690 = vmatprep.subr.mxu0 0.0
    %691 = vmatpush1.msra.mxu0 %v44
    %692 = vmatprep.subr.mxu0 0.0
    %693 = vmatpush1.msra.mxu0 %v43
    %694 = vmatprep.subr.mxu0 0.0
    %695 = vmatpush1.msra.mxu0 %v42
    %696 = vmatprep.subr.mxu0 0.0
    %697 = vmatpush1.msra.mxu0 %v41
    %698 = vmatprep.subr.mxu0 0.0
    %699 = vmatpush2.msra.mxu0 0.0
    %700 = vmatprep.subr.mxu0 0.0
    %701 = vmatpush2.msra.mxu0 0.0
    %702 = vmatprep.subr.mxu0 0.0
    %703 = vmatpush2.msra.mxu0 0.0
    %704 = vmatprep.subr.mxu0 0.0
    %705 = vmatpush2.msra.mxu0 0.0
    %706 = vmatprep.subr.mxu0 0.0
    %707 = vmatpush2.msra.mxu0 0.0
    %708 = vmatprep.subr.mxu0 0.0
    %709 = vmatpush2.msra.mxu0 0.0
    %710 = vmatprep.subr.mxu0 0.0
    %711 = vmatpush2.msra.mxu0 0.0
    %712 = vmatprep.subr.mxu0 0.0
    %713 = vmatpush2.msra.mxu0 0.0
    %714 = vmatprep.subr.mxu0 0.0
    %715 = vmatpush2.msra.mxu0 0.0
    %716 = vmatprep.subr.mxu0 0.0
    %717 = vmatpush2.msra.mxu0 0.0
    %718 = vmatprep.subr.mxu0 0.0
    %719 = vmatpush2.msra.mxu0 0.0
    %720 = vmatprep.subr.mxu0 0.0
    %721 = vmatpush2.msra.mxu0 0.0
    %722 = vmatprep.subr.mxu0 0.0
    %723 = vmatpush2.msra.mxu0 0.0
    %724 = vmatprep.subr.mxu0 0.0
    %725 = vmatpush2.msra.mxu0 0.0
    %726 = vmatprep.subr.mxu0 0.0
    %727 = vmatpush2.msra.mxu0 0.0
    %728 = vmatprep.subr.mxu0 0.0
    %729 = vmatpush2.msra.mxu0 0.0
    %730 = vmatprep.mubr.f32.mxu0 0.0
    %731 = vmatmul.mubr.f32.gmra.mxu0 %v664
    %v732 = vpop.f32.mrf.mxu0
    %v733 = vadd.f32 0.0, %v732
    %v734 = vpop.f32.mrf.mxu0
    %735 = vdwg.mxu0
    %v737 = vrot.slane %v733, 3
    %v739 = vadd.f32 %v131, %v737
    %v740 = vxor.u32 %v739, 2147483648
    %v741 = vmul.f32 %v740, 1.442695
    %v742 = vpow.pop %v741
    %v743 = vadd.f32 %v742, 1.0
    %v744 = vrcp.pop %v743
    %v745 = vmul.f32 1.0, %v744
    %v746 = vtanh.pop %v739
    %v748 = vrot.slane %v653, 7
    %v750 = vmul.f32 %v745, %v748
    %752 = vrot.lane.b32.xlu0 %v746, 64
    %v753 = vpop.permute.xlu0 %752
    %v755 = vmul.f32 %v745, %v753
    %757 = vrot.lane.b32.xlu0 %v755, 32
    %v758 = vpop.permute.xlu0 %757
    %v760 = vadd.f32 %v750, %v758
    %v761 = vtanh.pop %v760
    %763 = vrot.lane.b32.xlu0 %v761, 64
    %v764 = vpop.permute.xlu0 %763
    %v766 = vmul.f32 %v745, %v764
    %v768 = vrot.slane %v766, 5
    %769 = vrot.lane.b32.xlu0 %v768, 32
    %v770 = vpop.permute.xlu0 %769
    %v771 = vsel %vm134, %v770, 0
    %773 = vmatprep.subr.mxu0 0.0
    %774 = vmatpush1.msra.mxu0 0.0
    %775 = vmatprep.subr.mxu0 0.0
    %776 = vmatpush1.msra.mxu0 0.0
    %777 = vmatprep.subr.mxu0 0.0
    %778 = vmatpush1.msra.mxu0 0.0
    %779 = vmatprep.subr.mxu0 0.0
    %780 = vmatpush1.msra.mxu0 0.0
    %781 = vmatprep.subr.mxu0 0.0
    %782 = vmatpush1.msra.mxu0 0.0
    %783 = vmatprep.subr.mxu0 0.0
    %784 = vmatpush1.msra.mxu0 0.0
    %785 = vmatprep.subr.mxu0 0.0
    %786 = vmatpush1.msra.mxu0 0.0
    %787 = vmatprep.subr.mxu0 0.0
    %788 = vmatpush1.msra.mxu0 0.0
    %789 = vmatprep.subr.mxu0 0.0
    %790 = vmatpush1.msra.mxu0 0.0
    %791 = vmatprep.subr.mxu0 0.0
    %792 = vmatpush1.msra.mxu0 0.0
    %793 = vmatprep.subr.mxu0 0.0
    %794 = vmatpush1.msra.mxu0 0.0
    %795 = vmatprep.subr.mxu0 0.0
    %796 = vmatpush1.msra.mxu0 0.0
    %797 = vmatprep.subr.mxu0 0.0
    %798 = vmatpush1.msra.mxu0 %v44
    %799 = vmatprep.subr.mxu0 0.0
    %800 = vmatpush1.msra.mxu0 %v43
    %801 = vmatprep.subr.mxu0 0.0
    %802 = vmatpush1.msra.mxu0 %v42
    %803 = vmatprep.subr.mxu0 0.0
    %804 = vmatpush1.msra.mxu0 %v41
    %805 = vmatprep.subr.mxu0 0.0
    %806 = vmatpush2.msra.mxu0 0.0
    %807 = vmatprep.subr.mxu0 0.0
    %808 = vmatpush2.msra.mxu0 0.0
    %809 = vmatprep.subr.mxu0 0.0
    %810 = vmatpush2.msra.mxu0 0.0
    %811 = vmatprep.subr.mxu0 0.0
    %812 = vmatpush2.msra.mxu0 0.0
    %813 = vmatprep.subr.mxu0 0.0
    %814 = vmatpush2.msra.mxu0 0.0
    %815 = vmatprep.subr.mxu0 0.0
    %816 = vmatpush2.msra.mxu0 0.0
    %817 = vmatprep.subr.mxu0 0.0
    %818 = vmatpush2.msra.mxu0 0.0
    %819 = vmatprep.subr.mxu0 0.0
    %820 = vmatpush2.msra.mxu0 0.0
    %821 = vmatprep.subr.mxu0 0.0
    %822 = vmatpush2.msra.mxu0 0.0
    %823 = vmatprep.subr.mxu0 0.0
    %824 = vmatpush2.msra.mxu0 0.0
    %825 = vmatprep.subr.mxu0 0.0
    %826 = vmatpush2.msra.mxu0 0.0
    %827 = vmatprep.subr.mxu0 0.0
    %828 = vmatpush2.msra.mxu0 0.0
    %829 = vmatprep.subr.mxu0 0.0
    %830 = vmatpush2.msra.mxu0 0.0
    %831 = vmatprep.subr.mxu0 0.0
    %832 = vmatpush2.msra.mxu0 0.0
    %833 = vmatprep.subr.mxu0 0.0
    %834 = vmatpush2.msra.mxu0 0.0
    %835 = vmatprep.subr.mxu0 0.0
    %836 = vmatpush2.msra.mxu0 0.0
    %837 = vmatprep.mubr.f32.mxu0 0.0
    %838 = vmatmul.mubr.f32.gmra.mxu0 %v771
    %v839 = vpop.f32.mrf.mxu0
    %v840 = vadd.f32 0.0, %v839
    %v841 = vpop.f32.mrf.mxu0
    %842 = vdwg.mxu0
    %v844 = vrot.slane %v840, 2
    %v846 = vadd.f32 %v131, %v844
    %v847 = vxor.u32 %v846, 2147483648
    %v848 = vmul.f32 %v847, 1.442695
    %v849 = vpow.pop %v848
    %v850 = vadd.f32 %v849, 1.0
    %v851 = vrcp.pop %v850
    %v852 = vmul.f32 1.0, %v851
    %v853 = vtanh.pop %v846
    %v855 = vrot.slane %v760, 7
    %v857 = vmul.f32 %v852, %v855
    %859 = vrot.lane.b32.xlu0 %v853, 64
    %v860 = vpop.permute.xlu0 %859
    %v862 = vmul.f32 %v852, %v860
    %864 = vrot.lane.b32.xlu0 %v862, 32
    %v865 = vpop.permute.xlu0 %864
    %v867 = vadd.f32 %v857, %v865
    %v868 = vtanh.pop %v867
    %870 = vrot.lane.b32.xlu0 %v868, 64
    %v871 = vpop.permute.xlu0 %870
    %v873 = vmul.f32 %v852, %v871
    %v875 = vrot.slane %v873, 6
    %876 = vrot.lane.b32.xlu0 %v875, 32
    %v877 = vpop.permute.xlu0 %876
    %v878 = vsel %vm134, %v877, 0
    %880 = vmatprep.subr.mxu0 0.0
    %881 = vmatpush1.msra.mxu0 0.0
    %882 = vmatprep.subr.mxu0 0.0
    %883 = vmatpush1.msra.mxu0 0.0
    %884 = vmatprep.subr.mxu0 0.0
    %885 = vmatpush1.msra.mxu0 0.0
    %886 = vmatprep.subr.mxu0 0.0
    %887 = vmatpush1.msra.mxu0 0.0
    %888 = vmatprep.subr.mxu0 0.0
    %889 = vmatpush1.msra.mxu0 0.0
    %890 = vmatprep.subr.mxu0 0.0
    %891 = vmatpush1.msra.mxu0 0.0
    %892 = vmatprep.subr.mxu0 0.0
    %893 = vmatpush1.msra.mxu0 0.0
    %894 = vmatprep.subr.mxu0 0.0
    %895 = vmatpush1.msra.mxu0 0.0
    %896 = vmatprep.subr.mxu0 0.0
    %897 = vmatpush1.msra.mxu0 0.0
    %898 = vmatprep.subr.mxu0 0.0
    %899 = vmatpush1.msra.mxu0 0.0
    %900 = vmatprep.subr.mxu0 0.0
    %901 = vmatpush1.msra.mxu0 0.0
    %902 = vmatprep.subr.mxu0 0.0
    %903 = vmatpush1.msra.mxu0 0.0
    %904 = vmatprep.subr.mxu0 0.0
    %905 = vmatpush1.msra.mxu0 %v44
    %906 = vmatprep.subr.mxu0 0.0
    %907 = vmatpush1.msra.mxu0 %v43
    %908 = vmatprep.subr.mxu0 0.0
    %909 = vmatpush1.msra.mxu0 %v42
    %910 = vmatprep.subr.mxu0 0.0
    %911 = vmatpush1.msra.mxu0 %v41
    %912 = vmatprep.subr.mxu0 0.0
    %913 = vmatpush2.msra.mxu0 0.0
    %914 = vmatprep.subr.mxu0 0.0
    %915 = vmatpush2.msra.mxu0 0.0
    %916 = vmatprep.subr.mxu0 0.0
    %917 = vmatpush2.msra.mxu0 0.0
    %918 = vmatprep.subr.mxu0 0.0
    %919 = vmatpush2.msra.mxu0 0.0
    %920 = vmatprep.subr.mxu0 0.0
    %921 = vmatpush2.msra.mxu0 0.0
    %922 = vmatprep.subr.mxu0 0.0
    %923 = vmatpush2.msra.mxu0 0.0
    %924 = vmatprep.subr.mxu0 0.0
    %925 = vmatpush2.msra.mxu0 0.0
    %926 = vmatprep.subr.mxu0 0.0
    %927 = vmatpush2.msra.mxu0 0.0
    %928 = vmatprep.subr.mxu0 0.0
    %929 = vmatpush2.msra.mxu0 0.0
    %930 = vmatprep.subr.mxu0 0.0
    %931 = vmatpush2.msra.mxu0 0.0
    %932 = vmatprep.subr.mxu0 0.0
    %933 = vmatpush2.msra.mxu0 0.0
    %934 = vmatprep.subr.mxu0 0.0
    %935 = vmatpush2.msra.mxu0 0.0
    %936 = vmatprep.subr.mxu0 0.0
    %937 = vmatpush2.msra.mxu0 0.0
    %938 = vmatprep.subr.mxu0 0.0
    %939 = vmatpush2.msra.mxu0 0.0
    %940 = vmatprep.subr.mxu0 0.0
    %941 = vmatpush2.msra.mxu0 0.0
    %942 = vmatprep.subr.mxu0 0.0
    %943 = vmatpush2.msra.mxu0 0.0
    %944 = vmatprep.mubr.f32.mxu0 0.0
    %945 = vmatmul.mubr.f32.gmra.mxu0 %v878
    %v946 = vpop.f32.mrf.mxu0
    %v947 = vadd.f32 0.0, %v946
    %v948 = vpop.f32.mrf.mxu0
    %949 = vdwg.mxu0
    %v951 = vrot.slane %v947, 1
    %v953 = vadd.f32 %v131, %v951
    %v954 = vxor.u32 %v953, 2147483648
    %v955 = vmul.f32 %v954, 1.442695
    %v956 = vpow.pop %v955
    %v957 = vadd.f32 %v956, 1.0
    %v958 = vrcp.pop %v957
    %v959 = vmul.f32 1.0, %v958
    %v960 = vtanh.pop %v953
    %v962 = vrot.slane %v867, 7
    %v964 = vmul.f32 %v959, %v962
    %966 = vrot.lane.b32.xlu0 %v960, 64
    %v967 = vpop.permute.xlu0 %966
    %v969 = vmul.f32 %v959, %v967
    %971 = vrot.lane.b32.xlu0 %v969, 32
    %v972 = vpop.permute.xlu0 %971
    %v974 = vadd.f32 %v964, %v972
    %v975 = vtanh.pop %v974
    %977 = vrot.lane.b32.xlu0 %v975, 64
    %v978 = vpop.permute.xlu0 %977
    %v980 = vmul.f32 %v959, %v978
    %v981 = vlaneseq
    %v982 = vand.u32 %v981, 127
    %vm983 = vcmask 1040384
    %v984 = vsel %vm983, %v232, %v338
    %vm985 = vcmask 1041408
    %v986 = vsel %vm985, %v984, %v445
    %vm987 = vcmask 1042432
    %v988 = vsel %vm987, %v986, %v552
    %vm989 = vcmask 1043456
    %v990 = vsel %vm989, %v988, %v659
    %vm991 = vcmask 1044480
    %v992 = vsel %vm991, %v990, %v766
    %vm993 = vcmask 1045504
    %v994 = vsel %vm993, %v992, %v873
    %vm995 = vcmask 1046528
    %v996 = vsel %vm995, %v994, %v980
    %v998 = vrot.slane %v980, 7
    %v1000 = vrot.slane %v873, 5
    %v1002 = vrot.slane %v766, 3
    %v1004 = vrot.slane %v659, 1
    %v1006 = vrot.slane %v552, 7
    %v1008 = vrot.slane %v445, 5
    %v1010 = vrot.slane %v338, 3
    %v1012 = vrot.slane %v232, 1
    %v1014 = vsel %vm983, %v998, %v1000
    %v1015 = vsel %vm985, %v1014, %v1002
    %v1016 = vsel %vm987, %v1015, %v1004
    %v1017 = vsel %vm989, %v1016, %v1006
    %v1018 = vsel %vm991, %v1017, %v1008
    %v1019 = vsel %vm993, %v1018, %v1010
    %v1020 = vsel %vm995, %v1019, %v1012
    %vm1021 = vcmp.lt.s32.totalorder %v982, 16
    %v1022 = vsel %vm1021, 1, 0
    %vm1023 = vcmp.eq.s32.totalorder %v1022, 1
    %1025 = vrot.lane.b32.xlu0 %v996, 32
    %v1026 = vpop.permute.xlu0 %1025
    %1029 = vrot.lane.b32.xlu0 %v1020, 32
    %v1030 = vpop.permute.xlu0 %1029
    %v1032 = vsel %vm1023, %v1026, %v1030
    %v1033 = vsel %vm134, %v1032, 1.0
    %vm1034 = vcmask 326656
    %v1036 = vsel %vm1034, %v1033, 0
    %1038 = vmatprep.subr.mxu0 0.0
    %1039 = vmatpush1.msra.mxu0 0.0
    %1040 = vmatprep.subr.mxu0 0.0
    %1041 = vmatpush1.msra.mxu0 0.0
    %1042 = vmatprep.subr.mxu0 0.0
    %1043 = vmatpush1.msra.mxu0 0.0
    %1044 = vmatprep.subr.mxu0 0.0
    %1045 = vmatpush1.msra.mxu0 0.0
    %1046 = vmatprep.subr.mxu0 0.0
    %1047 = vmatpush1.msra.mxu0 0.0
    %1048 = vmatprep.subr.mxu0 0.0
    %1049 = vmatpush1.msra.mxu0 0.0
    %1050 = vmatprep.subr.mxu0 0.0
    %1051 = vmatpush1.msra.mxu0 0.0
    %1052 = vmatprep.subr.mxu0 0.0
    %1053 = vmatpush1.msra.mxu0 0.0
    %1054 = vmatprep.subr.mxu0 0.0
    %1055 = vmatpush1.msra.mxu0 0.0
    %1056 = vmatprep.subr.mxu0 0.0
    %1057 = vmatpush1.msra.mxu0 0.0
    %1058 = vmatprep.subr.mxu0 0.0
    %1059 = vmatpush1.msra.mxu0 0.0
    %1060 = vmatprep.subr.mxu0 0.0
    %1061 = vmatpush1.msra.mxu0 %v50
    %1062 = vmatprep.subr.mxu0 0.0
    %1063 = vmatpush1.msra.mxu0 %v49
    %1064 = vmatprep.subr.mxu0 0.0
    %1065 = vmatpush1.msra.mxu0 %v48
    %1066 = vmatprep.subr.mxu0 0.0
    %1067 = vmatpush1.msra.mxu0 %v47
    %1068 = vmatprep.subr.mxu0 0.0
    %1069 = vmatpush1.msra.mxu0 %v46
    %1070 = vmatprep.subr.mxu0 0.0
    %1071 = vmatpush2.msra.mxu0 0.0
    %1072 = vmatprep.subr.mxu0 0.0
    %1073 = vmatpush2.msra.mxu0 0.0
    %1074 = vmatprep.subr.mxu0 0.0
    %1075 = vmatpush2.msra.mxu0 0.0
    %1076 = vmatprep.subr.mxu0 0.0
    %1077 = vmatpush2.msra.mxu0 0.0
    %1078 = vmatprep.subr.mxu0 0.0
    %1079 = vmatpush2.msra.mxu0 0.0
    %1080 = vmatprep.subr.mxu0 0.0
    %1081 = vmatpush2.msra.mxu0 0.0
    %1082 = vmatprep.subr.mxu0 0.0
    %1083 = vmatpush2.msra.mxu0 0.0
    %1084 = vmatprep.subr.mxu0 0.0
    %1085 = vmatpush2.msra.mxu0 0.0
    %1086 = vmatprep.subr.mxu0 0.0
    %1087 = vmatpush2.msra.mxu0 0.0
    %1088 = vmatprep.subr.mxu0 0.0
    %1089 = vmatpush2.msra.mxu0 0.0
    %1090 = vmatprep.subr.mxu0 0.0
    %1091 = vmatpush2.msra.mxu0 0.0
    %1092 = vmatprep.subr.mxu0 0.0
    %1093 = vmatpush2.msra.mxu0 0.0
    %1094 = vmatprep.subr.mxu0 0.0
    %1095 = vmatpush2.msra.mxu0 0.0
    %1096 = vmatprep.subr.mxu0 0.0
    %1097 = vmatpush2.msra.mxu0 0.0
    %1098 = vmatprep.subr.mxu0 0.0
    %1099 = vmatpush2.msra.mxu0 0.0
    %1100 = vmatprep.subr.mxu0 0.0
    %1101 = vmatpush2.msra.mxu0 0.0
    %1102 = vmatprep.mubr.f32.mxu0 0.0
    %1103 = vmatmul.mubr.f32.gmra.mxu0 %v1036
    %v1104 = vpop.f32.mrf.mxu0
    %v1105 = vadd.f32 0.0, %v1104
    %v1106 = vpop.f32.mrf.mxu0
    %1107 = vdwg.mxu0
    %vm1108 = vcmask 130048
    %1109 = vst.msk [vmem:[#allocation8] sm:$0xff] %vm1108, %v1105
    %v1110 = vlaneseq
    %v1111 = vshrl.u32 %v1110, 7
    %v1112 = vadd.s32 %v1111, 8
    %vm1113 = vcmp.eq.s32.totalorder %v982, %v1111
    %vm1114 = vcmp.eq.s32.totalorder %v982, %v1112
    %v1115 = vlaneseq
    %v1116 = vshrl.u32 %v1115, 7
    %v1117 = vsub.s32 0, %v1116
    %v1118 = vrot.slane %v1105, %v1117
    %v1119 = vsel %vm1113, %v1118, -inf
    %v1120 = vsel %vm1114, %v1118, -inf
    %v1121 = vsel %vm1108, %v1119, -inf
    %1122 = vmax.xlane.f32.xlu0 %v1121
    %v1123 = vpop.xlane.xlu0 %1122
    %v1124 = vsel %vm1108, %v1120, -inf
    %1125 = vmax.xlane.f32.xlu0 %v1124
    %v1126 = vpop.xlane.xlu0 %1125
    %v1127 = vlaneseq
    %v1128 = vshrl.u32 %v1127, 7
    %v1129 = vsub.s32 2, %v1128
    %v1130 = vrot.slane %v1105, %v1129
    %v1131 = vsel %vm1113, %v1130, -inf
    %v1132 = vsel %vm1114, %v1130, -inf
    %v1133 = vsel %vm1108, %v1131, -inf
    %1134 = vmax.xlane.f32.xlu0 %v1133
    %v1135 = vpop.xlane.xlu0 %1134
    %v1136 = vsel %vm1108, %v1132, -inf
    %1137 = vmax.xlane.f32.xlu0 %v1136
    %v1138 = vpop.xlane.xlu0 %1137
    %v1139 = vlaneseq
    %v1140 = vshrl.u32 %v1139, 7
    %v1141 = vsub.s32 4, %v1140
    %v1142 = vrot.slane %v1105, %v1141
    %v1143 = vsel %vm1113, %v1142, -inf
    %v1144 = vsel %vm1114, %v1142, -inf
    %v1145 = vsel %vm1108, %v1143, -inf
    %1146 = vmax.xlane.f32.xlu0 %v1145
    %v1147 = vpop.xlane.xlu0 %1146
    %v1148 = vsel %vm1108, %v1144, -inf
    %1149 = vmax.xlane.f32.xlu0 %v1148
    %v1150 = vpop.xlane.xlu0 %1149
    %v1151 = vlaneseq
    %v1152 = vshrl.u32 %v1151, 7
    %v1153 = vsub.s32 6, %v1152
    %v1154 = vrot.slane %v1105, %v1153
    %v1155 = vsel %vm1113, %v1154, -inf
    %v1156 = vsel %vm1114, %v1154, -inf
    %v1157 = vsel %vm1108, %v1155, -inf
    %1158 = vmax.xlane.f32.xlu0 %v1157
    %v1159 = vpop.xlane.xlu0 %1158
    %v1160 = vsel %vm1108, %v1156, -inf
    %1161 = vmax.xlane.f32.xlu0 %v1160
    %v1162 = vpop.xlane.xlu0 %1161
    %vm1163 = vcmp.eq.s32.totalorder %v982, 7
    %v1164 = vsel %vm1163, 0.0, -10000.0
    %vm1165 = vcmp.lt.s32.totalorder %v982, 9
    %v1166 = vsel %vm1165, %v1164, -1e+30
    %v1167 = vadd.f32 %v1166, %v51
    %v1168 = vadd.f32 %v1166, %v52
    %v1169 = vsel %vm1108, %v1167, -inf
    %1170 = vmax.xlane.f32.xlu0 %v1169
    %v1171 = vpop.xlane.xlu0 %1170
    %v1172 = vsel %vm1108, %v1168, -inf
    %1173 = vmax.xlane.f32.xlu0 %v1172
    %v1174 = vpop.xlane.xlu0 %1173
    %v1175 = vadd.f32 %v1171, %v1123
    %v1176 = vadd.f32 %v1174, %v1126
    %v1177 = vadd.f32 %v1175, %v53
    %v1178 = vadd.f32 %v1176, %v54
    %v1179 = vsel %vm1108, %v1177, -inf
    %v1180 = vsel %vm1108, %v1178, -inf
    %v1181 = vmax.f32 %v1179, %v1180
    %v1182 = vrot.slane %v1181, 4
    %v1183 = vmax.f32 %v1181, %v1182
    %v1184 = vrot.slane %v1183, 2
    %v1185 = vmax.f32 %v1183, %v1184
    %v1186 = vrot.slane %v1185, 1
    %v1187 = vmax.f32 %v1185, %v1186
    %vm1188 = vcmp.eq.f32.partialorder %v1177, %v1187
    %vm1189 = vcmp.eq.f32.partialorder %v1178, %v1187
    %v1190 = vsel %vm1188, %v1111, 16
    %v1191 = vsel %vm1189, %v1112, 16
    %v1192 = vsel %vm1108, %v1190, 2147483647
    %v1193 = vsel %vm1108, %v1191, 2147483647
    %vm1194 = vcmp.lt.s32.totalorder %v1192, %v1193
    %v1195 = vsel %vm1194, %v1192, %v1193
    %v1196 = vrot.slane %v1195, 4
    %vm1197 = vcmp.lt.s32.totalorder %v1195, %v1196
    %v1198 = vsel %vm1197, %v1195, %v1196
    %v1199 = vrot.slane %v1198, 2
    %vm1200 = vcmp.lt.s32.totalorder %v1198, %v1199
    %v1201 = vsel %vm1200, %v1198, %v1199
    %v1202 = vrot.slane %v1201, 1
    %vm1203 = vcmp.lt.s32.totalorder %v1201, %v1202
    %v1204 = vsel %vm1203, %v1201, %v1202
    %v1205 = vadd.f32 %v1187, %v1105
    %v1206 = vlaneseq
    %v1207 = vshrl.u32 %v1206, 7
    %v1208 = vsub.s32 1, %v1207
    %v1209 = vrot.slane %v1205, %v1208
    %v1210 = vadd.f32 %v1209, %v51
    %v1211 = vadd.f32 %v1209, %v52
    %v1212 = vsel %vm1108, %v1210, -inf
    %1213 = vmax.xlane.f32.xlu0 %v1212
    %v1214 = vpop.xlane.xlu0 %1213
    %v1215 = vsel %vm1108, %v1211, -inf
    %1216 = vmax.xlane.f32.xlu0 %v1215
    %v1217 = vpop.xlane.xlu0 %1216
    %vm1218 = vcmp.eq.f32.partialorder %v1210, %v1214
    %vm1219 = vcmp.eq.f32.partialorder %v1211, %v1217
    %v1220 = vsel %vm1218, %v982, 16
    %v1221 = vsel %vm1219, %v982, 16
    %v1222 = vsel %vm1108, %v1220, 2147483647
    %v1223 = vand.u32 %v1222, 65535
    %v1224 = vshra.s32 %v1222, 16
    %v1225 = vcvt.s32.f32 %v1223
    %v1226 = vcvt.s32.f32 %v1224
    %1227 = vmin.xlane.f32.xlu0 %v1226
    %v1228 = vpop.xlane.xlu0 %1227
    %vm1229 = vcmp.eq.f32.partialorder %v1226, %v1228
    %v1230 = vsel %vm1229, %v1225, inf
    %1231 = vmin.xlane.f32.xlu0 %v1230
    %v1232 = vpop.xlane.xlu0 %1231
    %v1233 = vcvt.f32.s32 %v1232
    %v1234 = vcvt.f32.s32 %v1228
    %v1235 = vshll.u32 %v1234, 16
    %v1236 = vadd.s32 %v1235, %v1233
    %v1237 = vsel %vm1108, %v1221, 2147483647
    %v1238 = vand.u32 %v1237, 65535
    %v1239 = vshra.s32 %v1237, 16
    %v1240 = vcvt.s32.f32 %v1238
    %v1241 = vcvt.s32.f32 %v1239
    %1242 = vmin.xlane.f32.xlu0 %v1241
    %v1243 = vpop.xlane.xlu0 %1242
    %vm1244 = vcmp.eq.f32.partialorder %v1241, %v1243
    %v1245 = vsel %vm1244, %v1240, inf
    %1246 = vmin.xlane.f32.xlu0 %v1245
    %v1247 = vpop.xlane.xlu0 %1246
    %v1248 = vcvt.f32.s32 %v1247
    %v1249 = vcvt.f32.s32 %v1243
    %v1250 = vshll.u32 %v1249, 16
    %v1251 = vadd.s32 %v1250, %v1248
    %v1252 = vadd.f32 %v1214, %v1135
    %v1253 = vadd.f32 %v1217, %v1138
    %v1254 = vadd.f32 %v1252, %v53
    %v1255 = vadd.f32 %v1253, %v54
    %v1256 = vsel %vm1108, %v1254, -inf
    %v1257 = vsel %vm1108, %v1255, -inf
    %v1258 = vmax.f32 %v1256, %v1257
    %v1259 = vrot.slane %v1258, 4
    %v1260 = vmax.f32 %v1258, %v1259
    %v1261 = vrot.slane %v1260, 2
    %v1262 = vmax.f32 %v1260, %v1261
    %v1263 = vrot.slane %v1262, 1
    %v1264 = vmax.f32 %v1262, %v1263
    %vm1265 = vcmp.eq.f32.partialorder %v1254, %v1264
    %vm1266 = vcmp.eq.f32.partialorder %v1255, %v1264
    %v1267 = vsel %vm1265, %v1111, 16
    %v1268 = vsel %vm1266, %v1112, 16
    %v1269 = vsel %vm1108, %v1267, 2147483647
    %v1270 = vsel %vm1108, %v1268, 2147483647
    %vm1271 = vcmp.lt.s32.totalorder %v1269, %v1270
    %v1272 = vsel %vm1271, %v1269, %v1270
    %v1273 = vrot.slane %v1272, 4
    %vm1274 = vcmp.lt.s32.totalorder %v1272, %v1273
    %v1275 = vsel %vm1274, %v1272, %v1273
    %v1276 = vrot.slane %v1275, 2
    %vm1277 = vcmp.lt.s32.totalorder %v1275, %v1276
    %v1278 = vsel %vm1277, %v1275, %v1276
    %v1279 = vrot.slane %v1278, 1
    %vm1280 = vcmp.lt.s32.totalorder %v1278, %v1279
    %v1281 = vsel %vm1280, %v1278, %v1279
    %v1282 = vadd.f32 %v1264, %v1105
    %v1283 = vlaneseq
    %v1284 = vshrl.u32 %v1283, 7
    %v1285 = vsub.s32 3, %v1284
    %v1286 = vrot.slane %v1282, %v1285
    %v1287 = vadd.f32 %v1286, %v51
    %v1288 = vadd.f32 %v1286, %v52
    %v1289 = vsel %vm1108, %v1287, -inf
    %1290 = vmax.xlane.f32.xlu0 %v1289
    %v1291 = vpop.xlane.xlu0 %1290
    %v1292 = vsel %vm1108, %v1288, -inf
    %1293 = vmax.xlane.f32.xlu0 %v1292
    %v1294 = vpop.xlane.xlu0 %1293
    %vm1295 = vcmp.eq.f32.partialorder %v1287, %v1291
    %vm1296 = vcmp.eq.f32.partialorder %v1288, %v1294
    %v1297 = vsel %vm1295, %v982, 16
    %v1298 = vsel %vm1296, %v982, 16
    %v1299 = vsel %vm1108, %v1297, 2147483647
    %v1300 = vand.u32 %v1299, 65535
    %v1301 = vshra.s32 %v1299, 16
    %v1302 = vcvt.s32.f32 %v1300
    %v1303 = vcvt.s32.f32 %v1301
    %1304 = vmin.xlane.f32.xlu0 %v1303
    %v1305 = vpop.xlane.xlu0 %1304
    %vm1306 = vcmp.eq.f32.partialorder %v1303, %v1305
    %v1307 = vsel %vm1306, %v1302, inf
    %1308 = vmin.xlane.f32.xlu0 %v1307
    %v1309 = vpop.xlane.xlu0 %1308
    %v1310 = vcvt.f32.s32 %v1309
    %v1311 = vcvt.f32.s32 %v1305
    %v1312 = vshll.u32 %v1311, 16
    %v1313 = vadd.s32 %v1312, %v1310
    %v1314 = vsel %vm1108, %v1298, 2147483647
    %v1315 = vand.u32 %v1314, 65535
    %v1316 = vshra.s32 %v1314, 16
    %v1317 = vcvt.s32.f32 %v1315
    %v1318 = vcvt.s32.f32 %v1316
    %1319 = vmin.xlane.f32.xlu0 %v1318
    %v1320 = vpop.xlane.xlu0 %1319
    %vm1321 = vcmp.eq.f32.partialorder %v1318, %v1320
    %v1322 = vsel %vm1321, %v1317, inf
    %1323 = vmin.xlane.f32.xlu0 %v1322
    %v1324 = vpop.xlane.xlu0 %1323
    %v1325 = vcvt.f32.s32 %v1324
    %v1326 = vcvt.f32.s32 %v1320
    %v1327 = vshll.u32 %v1326, 16
    %v1328 = vadd.s32 %v1327, %v1325
    %v1329 = vadd.f32 %v1291, %v1147
    %v1330 = vadd.f32 %v1294, %v1150
    %v1331 = vadd.f32 %v1329, %v53
    %v1332 = vadd.f32 %v1330, %v54
    %v1333 = vsel %vm1108, %v1331, -inf
    %v1334 = vsel %vm1108, %v1332, -inf
    %v1335 = vmax.f32 %v1333, %v1334
    %v1336 = vrot.slane %v1335, 4
    %v1337 = vmax.f32 %v1335, %v1336
    %v1338 = vrot.slane %v1337, 2
    %v1339 = vmax.f32 %v1337, %v1338
    %v1340 = vrot.slane %v1339, 1
    %v1341 = vmax.f32 %v1339, %v1340
    %vm1342 = vcmp.eq.f32.partialorder %v1331, %v1341
    %vm1343 = vcmp.eq.f32.partialorder %v1332, %v1341
    %v1344 = vsel %vm1342, %v1111, 16
    %v1345 = vsel %vm1343, %v1112, 16
    %v1346 = vsel %vm1108, %v1344, 2147483647
    %v1347 = vsel %vm1108, %v1345, 2147483647
    %vm1348 = vcmp.lt.s32.totalorder %v1346, %v1347
    %v1349 = vsel %vm1348, %v1346, %v1347
    %v1350 = vrot.slane %v1349, 4
    %vm1351 = vcmp.lt.s32.totalorder %v1349, %v1350
    %v1352 = vsel %vm1351, %v1349, %v1350
    %v1353 = vrot.slane %v1352, 2
    %vm1354 = vcmp.lt.s32.totalorder %v1352, %v1353
    %v1355 = vsel %vm1354, %v1352, %v1353
    %v1356 = vrot.slane %v1355, 1
    %vm1357 = vcmp.lt.s32.totalorder %v1355, %v1356
    %v1358 = vsel %vm1357, %v1355, %v1356
    %v1359 = vadd.f32 %v1341, %v1105
    %v1360 = vlaneseq
    %v1361 = vshrl.u32 %v1360, 7
    %v1362 = vsub.s32 5, %v1361
    %v1363 = vrot.slane %v1359, %v1362
    %v1364 = vadd.f32 %v1363, %v51
    %v1365 = vadd.f32 %v1363, %v52
    %v1366 = vsel %vm1108, %v1364, -inf
    %1367 = vmax.xlane.f32.xlu0 %v1366
    %v1368 = vpop.xlane.xlu0 %1367
    %v1369 = vsel %vm1108, %v1365, -inf
    %1370 = vmax.xlane.f32.xlu0 %v1369
    %v1371 = vpop.xlane.xlu0 %1370
    %vm1372 = vcmp.eq.f32.partialorder %v1364, %v1368
    %vm1373 = vcmp.eq.f32.partialorder %v1365, %v1371
    %v1374 = vsel %vm1372, %v982, 16
    %v1375 = vsel %vm1373, %v982, 16
    %v1376 = vsel %vm1108, %v1374, 2147483647
    %v1377 = vand.u32 %v1376, 65535
    %v1378 = vshra.s32 %v1376, 16
    %v1379 = vcvt.s32.f32 %v1377
    %v1380 = vcvt.s32.f32 %v1378
    %1381 = vmin.xlane.f32.xlu0 %v1380
    %v1382 = vpop.xlane.xlu0 %1381
    %vm1383 = vcmp.eq.f32.partialorder %v1380, %v1382
    %v1384 = vsel %vm1383, %v1379, inf
    %1385 = vmin.xlane.f32.xlu0 %v1384
    %v1386 = vpop.xlane.xlu0 %1385
    %v1387 = vcvt.f32.s32 %v1386
    %v1388 = vcvt.f32.s32 %v1382
    %v1389 = vshll.u32 %v1388, 16
    %v1390 = vadd.s32 %v1389, %v1387
    %v1391 = vsel %vm1108, %v1375, 2147483647
    %v1392 = vand.u32 %v1391, 65535
    %v1393 = vshra.s32 %v1391, 16
    %v1394 = vcvt.s32.f32 %v1392
    %v1395 = vcvt.s32.f32 %v1393
    %1396 = vmin.xlane.f32.xlu0 %v1395
    %v1397 = vpop.xlane.xlu0 %1396
    %vm1398 = vcmp.eq.f32.partialorder %v1395, %v1397
    %v1399 = vsel %vm1398, %v1394, inf
    %1400 = vmin.xlane.f32.xlu0 %v1399
    %v1401 = vpop.xlane.xlu0 %1400
    %v1402 = vcvt.f32.s32 %v1401
    %v1403 = vcvt.f32.s32 %v1397
    %v1404 = vshll.u32 %v1403, 16
    %v1405 = vadd.s32 %v1404, %v1402
    %v1406 = vadd.f32 %v1368, %v1159
    %v1407 = vadd.f32 %v1371, %v1162
    %v1408 = vadd.f32 %v1406, %v53
    %v1409 = vadd.f32 %v1407, %v54
    %v1410 = vsel %vm1108, %v1408, -inf
    %v1411 = vsel %vm1108, %v1409, -inf
    %v1412 = vmax.f32 %v1410, %v1411
    %v1413 = vrot.slane %v1412, 4
    %v1414 = vmax.f32 %v1412, %v1413
    %v1415 = vrot.slane %v1414, 2
    %v1416 = vmax.f32 %v1414, %v1415
    %v1417 = vrot.slane %v1416, 1
    %v1418 = vmax.f32 %v1416, %v1417
    %vm1419 = vcmp.eq.f32.partialorder %v1408, %v1418
    %vm1420 = vcmp.eq.f32.partialorder %v1409, %v1418
    %v1421 = vsel %vm1419, %v1111, 16
    %v1422 = vsel %vm1420, %v1112, 16
    %v1423 = vsel %vm1108, %v1421, 2147483647
    %v1424 = vsel %vm1108, %v1422, 2147483647
    %vm1425 = vcmp.lt.s32.totalorder %v1423, %v1424
    %v1426 = vsel %vm1425, %v1423, %v1424
    %v1427 = vrot.slane %v1426, 4
    %vm1428 = vcmp.lt.s32.totalorder %v1426, %v1427
    %v1429 = vsel %vm1428, %v1426, %v1427
    %v1430 = vrot.slane %v1429, 2
    %vm1431 = vcmp.lt.s32.totalorder %v1429, %v1430
    %v1432 = vsel %vm1431, %v1429, %v1430
    %v1433 = vrot.slane %v1432, 1
    %vm1434 = vcmp.lt.s32.totalorder %v1432, %v1433
    %v1435 = vsel %vm1434, %v1432, %v1433
    %v1436 = vadd.f32 %v1418, %v1105
    %v1438 = vrot.slane %v52, 1
    %v1440 = vadd.f32 %v1436, %v1438
    %vm1441 = vcmask 130055
    %v1442 = vsel %vm1441, %v1440, -inf
    %1443 = vmax.xlane.f32.xlu0 %v1442
    %v1444 = vpop.xlane.xlu0 %1443
    %vm1445 = vcmp.eq.f32.partialorder %v1440, %v1444
    %v1446 = vsel %vm1445, %v982, 16
    %v1447 = vsel %vm1441, %v1446, 2147483647
    %v1448 = vand.u32 %v1447, 65535
    %v1449 = vshra.s32 %v1447, 16
    %v1450 = vcvt.s32.f32 %v1448
    %v1451 = vcvt.s32.f32 %v1449
    %1452 = vmin.xlane.f32.xlu0 %v1451
    %v1453 = vpop.xlane.xlu0 %1452
    %vm1454 = vcmp.eq.f32.partialorder %v1451, %v1453
    %v1455 = vsel %vm1454, %v1450, inf
    %1456 = vmin.xlane.f32.xlu0 %v1455
    %v1457 = vpop.xlane.xlu0 %1456
    %v1458 = vcvt.f32.s32 %v1457
    %v1459 = vcvt.f32.s32 %v1453
    %v1460 = vshll.u32 %v1459, 16
    %v1461 = vadd.s32 %v1460, %v1458
    %vm1462 = vcmask 7175
    %1463 = vst.msk [vmem:[#allocation5 - $0x7] sm:$0x80] %vm1462, %v1444
    %vm1464 = vcmp.eq.s32.totalorder %v982, %v1461
    %v1465 = vsel %vm1464, 1, 0
    %v1466 = vsel %vm1464, %v1435, 0
    %v1467 = vsel %vm1441, %v1466, 0
    %v1468 = vand.u32 %v1467, 65535
    %v1469 = vshrl.u32 %v1467, 16
    %v1470 = vcvt.s32.f32 %v1468
    %v1471 = vcvt.s32.f32 %v1469
    %1472 = vadd.xlane.f32.xlu0 %v1470
    %v1473 = vpop.xlane.xlu0 %1472
    %1474 = vadd.xlane.f32.xlu0 %v1471
    %v1475 = vpop.xlane.xlu0 %1474
    %v1476 = vcvt.f32.s32 %v1473
    %v1477 = vcvt.f32.s32 %v1475
    %v1478 = vshll.u32 %v1477, 16
    %v1479 = vadd.s32 %v1478, %v1476
    %vm1480 = vcmp.eq.s32.totalorder %v982, %v1479
    %v1481 = vsel %vm1480, 1, 0
    %v1482 = vlaneseq
    %v1483 = vshrl.u32 %v1482, 7
    %v1484 = vsub.s32 7, %v1483
    %v1485 = vrot.slane %v1479, %v1484
    %vm1486 = vcmp.eq.s32.totalorder %v1111, %v1485
    %vm1487 = vcmp.eq.s32.totalorder %v1112, %v1485
    %v1488 = vsel %vm1486, %v1390, 0
    %v1489 = vsel %vm1487, %v1405, 0
    %v1490 = vadd.s32 %v1488, %v1489
    %v1491 = vrot.slane %v1490, 4
    %v1492 = vadd.s32 %v1490, %v1491
    %v1493 = vrot.slane %v1492, 2
    %v1494 = vadd.s32 %v1492, %v1493
    %v1495 = vrot.slane %v1494, 1
    %v1496 = vadd.s32 %v1494, %v1495
    %vm1497 = vcmp.eq.s32.totalorder %v982, %v1496
    %v1498 = vsel %vm1497, 1, 0
    %v1499 = vsel %vm1497, %v1358, 0
    %v1500 = vsel %vm1108, %v1499, 0
    %v1501 = vand.u32 %v1500, 65535
    %v1502 = vshrl.u32 %v1500, 16
    %v1503 = vcvt.s32.f32 %v1501
    %v1504 = vcvt.s32.f32 %v1502
    %1505 = vadd.xlane.f32.xlu0 %v1503
    %v1506 = vpop.xlane.xlu0 %1505
    %1507 = vadd.xlane.f32.xlu0 %v1504
    %v1508 = vpop.xlane.xlu0 %1507
    %v1509 = vcvt.f32.s32 %v1506
    %v1510 = vcvt.f32.s32 %v1508
    %v1511 = vshll.u32 %v1510, 16
    %v1512 = vadd.s32 %v1511, %v1509
    %vm1513 = vcmp.eq.s32.totalorder %v982, %v1512
    %v1514 = vsel %vm1513, 1, 0
    %vm1515 = vcmp.eq.s32.totalorder %v1111, %v1512
    %vm1516 = vcmp.eq.s32.totalorder %v1112, %v1512
    %v1517 = vsel %vm1515, %v1313, 0
    %v1518 = vsel %vm1516, %v1328, 0
    %v1519 = vadd.s32 %v1517, %v1518
    %v1520 = vrot.slane %v1519, 4
    %v1521 = vadd.s32 %v1519, %v1520
    %v1522 = vrot.slane %v1521, 2
    %v1523 = vadd.s32 %v1521, %v1522
    %v1524 = vrot.slane %v1523, 1
    %v1525 = vadd.s32 %v1523, %v1524
    %vm1526 = vcmp.eq.s32.totalorder %v982, %v1525
    %v1527 = vsel %vm1526, 1, 0
    %v1528 = vsel %vm1526, %v1281, 0
    %v1529 = vsel %vm1108, %v1528, 0
    %v1530 = vand.u32 %v1529, 65535
    %v1531 = vshrl.u32 %v1529, 16
    %v1532 = vcvt.s32.f32 %v1530
    %v1533 = vcvt.s32.f32 %v1531
    %1534 = vadd.xlane.f32.xlu0 %v1532
    %v1535 = vpop.xlane.xlu0 %1534
    %1536 = vadd.xlane.f32.xlu0 %v1533
    %v1537 = vpop.xlane.xlu0 %1536
    %v1538 = vcvt.f32.s32 %v1535
    %v1539 = vcvt.f32.s32 %v1537
    %v1540 = vshll.u32 %v1539, 16
    %v1541 = vadd.s32 %v1540, %v1538
    %vm1542 = vcmp.eq.s32.totalorder %v982, %v1541
    %v1543 = vsel %vm1542, 1, 0
    %vm1544 = vcmp.eq.s32.totalorder %v1111, %v1541
    %vm1545 = vcmp.eq.s32.totalorder %v1112, %v1541
    %v1546 = vsel %vm1544, %v1236, 0
    %v1547 = vsel %vm1545, %v1251, 0
    %v1548 = vadd.s32 %v1546, %v1547
    %v1549 = vrot.slane %v1548, 4
    %v1550 = vadd.s32 %v1548, %v1549
    %v1551 = vrot.slane %v1550, 2
    %v1552 = vadd.s32 %v1550, %v1551
    %v1553 = vrot.slane %v1552, 1
    %v1554 = vadd.s32 %v1552, %v1553
    %vm1555 = vcmp.eq.s32.totalorder %v982, %v1554
    %v1556 = vsel %vm1555, 1, 0
    %v1557 = vsel %vm1555, %v1204, 0
    %v1558 = vsel %vm1108, %v1557, 0
    %v1559 = vand.u32 %v1558, 65535
    %v1560 = vshrl.u32 %v1558, 16
    %v1561 = vcvt.s32.f32 %v1559
    %v1562 = vcvt.s32.f32 %v1560
    %1563 = vadd.xlane.f32.xlu0 %v1561
    %v1564 = vpop.xlane.xlu0 %1563
    %1565 = vadd.xlane.f32.xlu0 %v1562
    %v1566 = vpop.xlane.xlu0 %1565
    %v1567 = vcvt.f32.s32 %v1564
    %v1568 = vcvt.f32.s32 %v1566
    %v1569 = vshll.u32 %v1568, 16
    %v1570 = vadd.s32 %v1569, %v1567
    %vm1571 = vcmp.eq.s32.totalorder %v982, %v1570
    %v1572 = vsel %vm1571, 1, 0
    %v1573 = vrot.slane %v1481, 1
    %v1574 = vsel %vm983, %v1572, %v1556
    %v1575 = vsel %vm985, %v1574, %v1543
    %v1576 = vsel %vm987, %v1575, %v1527
    %v1577 = vsel %vm989, %v1576, %v1514
    %v1578 = vsel %vm991, %v1577, %v1498
    %v1579 = vsel %vm993, %v1578, %v1573
    %v1580 = vsel %vm995, %v1579, %v1465
    %1581 = vst.msk [vmem:[#allocation6] sm:$0xff] %vm1108, %v1580
    // Predicated region
    $region18: #{tpu_custom_call.1} parent=1 // pred_check
      _
    $region19: #{tpu_custom_call.1} parent=1 // pred_check_branch
      %1583 = sbr.rel (0) target = $region21
    $region20: #{tpu_custom_call.1} parent=1 // pred_region
      %s1585 = ssub.s32 16, 16
      %1586 = vsyncadd [#allocation4], %s1585
      %s1588 = sshll.u32 [#allocation5], 4
      %s1589 = int_to_ptr.vmem [resolvable:$true] %s1588
      %1591 = dma.vmem_to_hbm [thread:$0]  %s1589, 16, %s3, [#allocation4]
    $region21: #{tpu_custom_call.1} parent=1 // pred_fallthru
      _
    // Predicated region
    $region22: #{tpu_custom_call.1} parent=1 // pred_check
      _
    $region23: #{tpu_custom_call.1} parent=1 // pred_check_branch
      %1593 = sbr.rel (0) target = $region25
    $region24: #{tpu_custom_call.1} parent=1 // pred_region
      %s1595 = ssub.s32 128, 128
      %1596 = vsyncadd [#allocation7], %s1595
      %s1598 = sshll.u32 [#allocation6], 4
      %s1599 = int_to_ptr.vmem [resolvable:$true] %s1598
      %1601 = dma.vmem_to_hbm [thread:$0]  %s1599, 128, %s4, [#allocation7]
    $region25: #{tpu_custom_call.1} parent=1 // pred_fallthru
      _
    // Predicated region
    $region26: #{tpu_custom_call.1} parent=1 // pred_check
      _
    $region27: #{tpu_custom_call.1} parent=1 // pred_check_branch
      %1603 = sbr.rel (0) target = $region29
    $region28: #{tpu_custom_call.1} parent=1 // pred_region
      %s1605 = ssub.s32 128, 128
      %1606 = vsyncadd [#allocation7], %s1605
      %s1608 = sshll.u32 [#allocation8], 4
      %s1609 = int_to_ptr.vmem [resolvable:$true] %s1608
      %1611 = dma.vmem_to_hbm [thread:$0]  %s1609, 128, %s5, [#allocation7]
    $region29: #{tpu_custom_call.1} parent=1 // pred_fallthru
      _
    // Predicated region
    $region30: #{tpu_custom_call.1} parent=1 // pred_check
      _
    $region31: #{tpu_custom_call.1} parent=1 // pred_check_branch
      %1613 = sbr.rel (0) target = $region33
    $region32: #{tpu_custom_call.1} parent=1 // pred_region
      %1614 = dma.done [#allocation4], 16
    $region33: #{tpu_custom_call.1} parent=1 // pred_fallthru
      _
    // Predicated region
    $region34: #{tpu_custom_call.1} parent=1 // pred_check
      _
    $region35: #{tpu_custom_call.1} parent=1 // pred_check_branch
      %1616 = sbr.rel (0) target = $region37
    $region36: #{tpu_custom_call.1} parent=1 // pred_region
      %1617 = dma.done [#allocation7], 128
    $region37: #{tpu_custom_call.1} parent=1 // pred_fallthru
      _
    // Predicated region
    $region38: #{tpu_custom_call.1} parent=1 // pred_check
      _
    $region39: #{tpu_custom_call.1} parent=1 // pred_check_branch
      %1619 = sbr.rel (0) target = $region41
    $region40: #{tpu_custom_call.1} parent=1 // pred_region
      %1620 = dma.done [#allocation7], 128
    $region41: #{tpu_custom_call.1} parent=1 // pred_fallthru
      _
    %1621 = vsyncpa [#allocation3], 1
    %1622 = vsyncpa [#allocation4], 1
    %1623 = vsyncpa [#allocation7], 1

</llo_original>
